<compile_context>
chip_gen: v6e
topology: v6e:2x2x1
jax: 0.10.0
libtpu: 0.0.40
codegen_flags: <defaults>
</compile_context>

<pallas_src>
import math

import jax
import jax.numpy as jnp
from jax.experimental import pallas as pl
from jax.experimental.pallas import tpu as pltpu


def _pick_tile_h(H):
    """Largest multiple-of-8 divisor of H (capped at 256), else H (full dim)."""
    for th in range(min(H, 256), 7, -1):
        if H % th == 0 and th % 8 == 0:
            return th
    return H


def output_block_forward(x_nchw, weight_oihw, kernel_size=3, tile_h=None):
    """Forward of _OutputBlock: ReflectionPad2d(K//2) -> Conv2d(no bias) -> Tanh.

    x_nchw:      (N, Cin, H, W)    float32
    weight_oihw: (Cout, Cin, K, K) float32 (PyTorch conv weight layout)
    returns:     (N, Cout, H, W)   float32
    """
    K = int(kernel_size)
    # ReflectionPad2d(K//2) + VALID conv only reproduces 'same'-sized output
    # (and PyTorch centering) for odd K.
    assert K % 2 == 1, "kernel_size must be odd to match the PyTorch module"
    pad = K // 2

    N, Cin, H, W = x_nchw.shape
    Cout = weight_oihw.shape[0]
    assert weight_oihw.shape == (Cout, Cin, K, K)

    # Reflection pad H and W in one pass; layout stays NCHW (no transposes).
    x_pad = jnp.pad(x_nchw, ((0, 0), (0, 0), (pad, pad), (pad, pad)),
                    mode="reflect")
    Hp, Wp = H + 2 * pad, W + 2 * pad

    if tile_h is None:
        tile_h = _pick_tile_h(H)
    TH = int(tile_h)
    assert H % TH == 0, "tile_h must divide H"
    assert TH == H or TH % 8 == 0, "tile_h must be a multiple of 8 (or == H)"
    n_t = H // TH

    # Conv weights as a flat f32 vector -> SMEM (just 108 scalars here).
    w_flat = weight_oihw.astype(jnp.float32).reshape(-1)

    def kernel(w_ref, x_ref, o_ref):
        # w_ref: SMEM (Cout*Cin*K*K,) f32    scalar weights
        # x_ref: VMEM (1, Cin, Hp, Wp)       full padded image (one batch elem)
        # o_ref: VMEM (1, Cout, TH, W)       output H-tile
        t = pl.program_id(1)
        row0 = t * TH
        if TH % 8 == 0:
            row0 = pl.multiple_of(row0, 8)

        accs = [jnp.zeros((TH, W), jnp.float32) for _ in range(Cout)]
        for ci in range(Cin):
            for kh in range(K):
                # Lane-dense (TH, Wp) row band of this input channel.
                band = x_ref[0, ci, pl.ds(row0 + kh, TH), :]
                for kw in range(K):
                    win = band[:, kw:kw + W]          # shifted (TH, W) window
                    for co in range(Cout):
                        wgt = w_ref[((co * Cin + ci) * K + kh) * K + kw]
                        accs[co] = accs[co] + wgt * win

        # tanh goes to the EUP (separate slot) and the stores are lane-dense.
        for co in range(Cout):
            o_ref[0, co, :, :] = jnp.tanh(accs[co]).astype(o_ref.dtype)

    # VMEM budget: 2x input block (double-buffered), 2x output block, + acc.
    in_block = Cin * Hp * Wp * 4
    out_block = Cout * TH * W * 4
    est = 2 * in_block + 3 * out_block
    vmem_limit = int(min(64 << 20, max(32 << 20, 2 * est)))

    out = pl.pallas_call(
        kernel,
        out_shape=jax.ShapeDtypeStruct((N, Cout, H, W), x_nchw.dtype),
        grid_spec=pltpu.PrefetchScalarGridSpec(
            num_scalar_prefetch=0,
            grid=(N, n_t),
            in_specs=[
                # Whole weight vector lives in SMEM (scalar reads -> splats).
                pl.BlockSpec(memory_space=pltpu.MemorySpace.SMEM),
                # Full padded image; same block across the H-tile axis, so it
                # stays resident in VMEM (fetched once per batch element).
                pl.BlockSpec((1, Cin, Hp, Wp), lambda n, t: (n, 0, 0, 0)),
            ],
            out_specs=pl.BlockSpec((1, Cout, TH, W), lambda n, t: (n, 0, t, 0)),
        ),
        compiler_params=pltpu.CompilerParams(
            dimension_semantics=("parallel", "parallel"),
            vmem_limit_bytes=vmem_limit,
        ),
    )(w_flat, x_pad)
    return out


if __name__ == "__main__":
    key = jax.random.PRNGKey(0)
    kx, kw = jax.random.split(key)

    # Small shapes consistent with the module: input_nc=4, output_nc=3, k=3
    N, Cin, Cout, H, W, K = 2, 4, 3, 16, 16, 3

    x = jax.random.normal(kx, (N, Cin, H, W), dtype=jnp.float32)

    # Deterministic conv weight (PyTorch layout: Cout, Cin, K, K), no bias.
    fan_in = Cin * K * K
    bound = 1.0 / math.sqrt(fan_in)
    weight = jax.random.uniform(kw, (Cout, Cin, K, K), dtype=jnp.float32,
                                minval=-bound, maxval=bound)

    # Pure-JAX reference.
    x_pad_ref = jnp.pad(x, ((0, 0), (0, 0), (1, 1), (1, 1)), mode="reflect")
    ref = jax.lax.conv_general_dilated(
        x_pad_ref, weight, window_strides=(1, 1), padding="VALID",
        dimension_numbers=("NCHW", "OIHW", "NCHW"))
    ref = jnp.tanh(ref)

    # Multi-H-tile path (grid = (N, 2)).
    out_tiled = jax.block_until_ready(
        output_block_forward(x, weight, kernel_size=K, tile_h=8))
    # Auto-picked tile (single H tile at this size, TH == H).
    out_full = jax.block_until_ready(
        output_block_forward(x, weight, kernel_size=K))

    for out in (out_tiled, out_full):
        assert out.shape == (N, Cout, H, W), out.shape
        err = float(jnp.max(jnp.abs(out - ref)))
        assert jnp.allclose(out, ref, atol=1e-5, rtol=1e-5), err

    print("KERNEL_OK")
</pallas_src>

<mosaic_0001>
module attributes {stable_mosaic.version = 11 : i64} {
  func.func @kernel(%arg0: i32, %arg1: i32, %arg2: memref<108xf32, #tpu.memory_space<smem>>, %arg3: memref<1x4x18x18xf32, #tpu.memory_space<vmem>>, %arg4: memref<1x3x8x16xf32, #tpu.memory_space<vmem>>) attributes {dimension_semantics = [#tpu.dimension_semantics<parallel>, #tpu.dimension_semantics<parallel>], iteration_bounds = array<i64: 2, 2>, scalar_prefetch = 0 : i64, scratch_operands = 0 : i64, tpu.core_type = #tpu.core_type<tc>, window_params = [{transform_indices = @transform_0, window_bounds = array<i64: 108>}, {transform_indices = @transform_1, window_bounds = array<i64: 1, 4, 18, 18>}, {transform_indices = @transform_2, window_bounds = array<i64: 1, 3, 8, 16>}]} {
    %c8_i32 = arith.constant 8 : i32
    %0 = arith.muli %arg1, %c8_i32 : i32
    %1 = tpu.assume_multiple %0, 8 : i32
    %cst = arith.constant 0.000000e+00 : f32
    %2 = vector.broadcast %cst : f32 to vector<8x16xf32>
    %cst_0 = arith.constant 0.000000e+00 : f32
    %3 = vector.broadcast %cst_0 : f32 to vector<8x16xf32>
    %cst_1 = arith.constant 0.000000e+00 : f32
    %4 = vector.broadcast %cst_1 : f32 to vector<8x16xf32>
    %c0_i32 = arith.constant 0 : i32
    %5 = arith.addi %1, %c0_i32 : i32
    %c0 = arith.constant 0 : index
    %c0_2 = arith.constant 0 : index
    %6 = arith.index_cast %5 : i32 to index
    %c0_3 = arith.constant 0 : index
    %7 = vector.load %arg3[%c0, %c0_2, %6, %c0_3] : memref<1x4x18x18xf32, #tpu.memory_space<vmem>>, vector<1x1x8x18xf32>
    %8 = vector.shape_cast %7 : vector<1x1x8x18xf32> to vector<8x18xf32>
    %9 = vector.extract_strided_slice %8 {offsets = [0, 0], sizes = [8, 16], strides = [1, 1]} : vector<8x18xf32> to vector<8x16xf32>
    %c0_4 = arith.constant 0 : index
    %10 = memref.load %arg2[%c0_4] : memref<108xf32, #tpu.memory_space<smem>>
    %11 = vector.broadcast %10 : f32 to vector<8x16xf32>
    %12 = arith.mulf %11, %9 : vector<8x16xf32>
    %13 = arith.addf %2, %12 : vector<8x16xf32>
    %c36 = arith.constant 36 : index
    %14 = memref.load %arg2[%c36] : memref<108xf32, #tpu.memory_space<smem>>
    %15 = vector.broadcast %14 : f32 to vector<8x16xf32>
    %16 = arith.mulf %15, %9 : vector<8x16xf32>
    %17 = arith.addf %3, %16 : vector<8x16xf32>
    %c72 = arith.constant 72 : index
    %18 = memref.load %arg2[%c72] : memref<108xf32, #tpu.memory_space<smem>>
    %19 = vector.broadcast %18 : f32 to vector<8x16xf32>
    %20 = arith.mulf %19, %9 : vector<8x16xf32>
    %21 = arith.addf %4, %20 : vector<8x16xf32>
    %22 = vector.extract_strided_slice %8 {offsets = [0, 1], sizes = [8, 16], strides = [1, 1]} : vector<8x18xf32> to vector<8x16xf32>
    %c1 = arith.constant 1 : index
    %23 = memref.load %arg2[%c1] : memref<108xf32, #tpu.memory_space<smem>>
    %24 = vector.broadcast %23 : f32 to vector<8x16xf32>
    %25 = arith.mulf %24, %22 : vector<8x16xf32>
    %26 = arith.addf %13, %25 : vector<8x16xf32>
    %c37 = arith.constant 37 : index
    %27 = memref.load %arg2[%c37] : memref<108xf32, #tpu.memory_space<smem>>
    %28 = vector.broadcast %27 : f32 to vector<8x16xf32>
    %29 = arith.mulf %28, %22 : vector<8x16xf32>
    %30 = arith.addf %17, %29 : vector<8x16xf32>
    %c73 = arith.constant 73 : index
    %31 = memref.load %arg2[%c73] : memref<108xf32, #tpu.memory_space<smem>>
    %32 = vector.broadcast %31 : f32 to vector<8x16xf32>
    %33 = arith.mulf %32, %22 : vector<8x16xf32>
    %34 = arith.addf %21, %33 : vector<8x16xf32>
    %35 = vector.extract_strided_slice %8 {offsets = [0, 2], sizes = [8, 16], strides = [1, 1]} : vector<8x18xf32> to vector<8x16xf32>
    %c2 = arith.constant 2 : index
    %36 = memref.load %arg2[%c2] : memref<108xf32, #tpu.memory_space<smem>>
    %37 = vector.broadcast %36 : f32 to vector<8x16xf32>
    %38 = arith.mulf %37, %35 : vector<8x16xf32>
    %39 = arith.addf %26, %38 : vector<8x16xf32>
    %c38 = arith.constant 38 : index
    %40 = memref.load %arg2[%c38] : memref<108xf32, #tpu.memory_space<smem>>
    %41 = vector.broadcast %40 : f32 to vector<8x16xf32>
    %42 = arith.mulf %41, %35 : vector<8x16xf32>
    %43 = arith.addf %30, %42 : vector<8x16xf32>
    %c74 = arith.constant 74 : index
    %44 = memref.load %arg2[%c74] : memref<108xf32, #tpu.memory_space<smem>>
    %45 = vector.broadcast %44 : f32 to vector<8x16xf32>
    %46 = arith.mulf %45, %35 : vector<8x16xf32>
    %47 = arith.addf %34, %46 : vector<8x16xf32>
    %c1_i32 = arith.constant 1 : i32
    %48 = arith.addi %1, %c1_i32 : i32
    %c0_5 = arith.constant 0 : index
    %c0_6 = arith.constant 0 : index
    %49 = arith.index_cast %48 : i32 to index
    %c0_7 = arith.constant 0 : index
    %50 = vector.load %arg3[%c0_5, %c0_6, %49, %c0_7] : memref<1x4x18x18xf32, #tpu.memory_space<vmem>>, vector<1x1x8x18xf32>
    %51 = vector.shape_cast %50 : vector<1x1x8x18xf32> to vector<8x18xf32>
    %52 = vector.extract_strided_slice %51 {offsets = [0, 0], sizes = [8, 16], strides = [1, 1]} : vector<8x18xf32> to vector<8x16xf32>
    %c3 = arith.constant 3 : index
    %53 = memref.load %arg2[%c3] : memref<108xf32, #tpu.memory_space<smem>>
    %54 = vector.broadcast %53 : f32 to vector<8x16xf32>
    %55 = arith.mulf %54, %52 : vector<8x16xf32>
    %56 = arith.addf %39, %55 : vector<8x16xf32>
    %c39 = arith.constant 39 : index
    %57 = memref.load %arg2[%c39] : memref<108xf32, #tpu.memory_space<smem>>
    %58 = vector.broadcast %57 : f32 to vector<8x16xf32>
    %59 = arith.mulf %58, %52 : vector<8x16xf32>
    %60 = arith.addf %43, %59 : vector<8x16xf32>
    %c75 = arith.constant 75 : index
    %61 = memref.load %arg2[%c75] : memref<108xf32, #tpu.memory_space<smem>>
    %62 = vector.broadcast %61 : f32 to vector<8x16xf32>
    %63 = arith.mulf %62, %52 : vector<8x16xf32>
    %64 = arith.addf %47, %63 : vector<8x16xf32>
    %65 = vector.extract_strided_slice %51 {offsets = [0, 1], sizes = [8, 16], strides = [1, 1]} : vector<8x18xf32> to vector<8x16xf32>
    %c4 = arith.constant 4 : index
    %66 = memref.load %arg2[%c4] : memref<108xf32, #tpu.memory_space<smem>>
    %67 = vector.broadcast %66 : f32 to vector<8x16xf32>
    %68 = arith.mulf %67, %65 : vector<8x16xf32>
    %69 = arith.addf %56, %68 : vector<8x16xf32>
    %c40 = arith.constant 40 : index
    %70 = memref.load %arg2[%c40] : memref<108xf32, #tpu.memory_space<smem>>
    %71 = vector.broadcast %70 : f32 to vector<8x16xf32>
    %72 = arith.mulf %71, %65 : vector<8x16xf32>
    %73 = arith.addf %60, %72 : vector<8x16xf32>
    %c76 = arith.constant 76 : index
    %74 = memref.load %arg2[%c76] : memref<108xf32, #tpu.memory_space<smem>>
    %75 = vector.broadcast %74 : f32 to vector<8x16xf32>
    %76 = arith.mulf %75, %65 : vector<8x16xf32>
    %77 = arith.addf %64, %76 : vector<8x16xf32>
    %78 = vector.extract_strided_slice %51 {offsets = [0, 2], sizes = [8, 16], strides = [1, 1]} : vector<8x18xf32> to vector<8x16xf32>
    %c5 = arith.constant 5 : index
    %79 = memref.load %arg2[%c5] : memref<108xf32, #tpu.memory_space<smem>>
    %80 = vector.broadcast %79 : f32 to vector<8x16xf32>
    %81 = arith.mulf %80, %78 : vector<8x16xf32>
    %82 = arith.addf %69, %81 : vector<8x16xf32>
    %c41 = arith.constant 41 : index
    %83 = memref.load %arg2[%c41] : memref<108xf32, #tpu.memory_space<smem>>
    %84 = vector.broadcast %83 : f32 to vector<8x16xf32>
    %85 = arith.mulf %84, %78 : vector<8x16xf32>
    %86 = arith.addf %73, %85 : vector<8x16xf32>
    %c77 = arith.constant 77 : index
    %87 = memref.load %arg2[%c77] : memref<108xf32, #tpu.memory_space<smem>>
    %88 = vector.broadcast %87 : f32 to vector<8x16xf32>
    %89 = arith.mulf %88, %78 : vector<8x16xf32>
    %90 = arith.addf %77, %89 : vector<8x16xf32>
    %c2_i32 = arith.constant 2 : i32
    %91 = arith.addi %1, %c2_i32 : i32
    %c0_8 = arith.constant 0 : index
    %c0_9 = arith.constant 0 : index
    %92 = arith.index_cast %91 : i32 to index
    %c0_10 = arith.constant 0 : index
    %93 = vector.load %arg3[%c0_8, %c0_9, %92, %c0_10] : memref<1x4x18x18xf32, #tpu.memory_space<vmem>>, vector<1x1x8x18xf32>
    %94 = vector.shape_cast %93 : vector<1x1x8x18xf32> to vector<8x18xf32>
    %95 = vector.extract_strided_slice %94 {offsets = [0, 0], sizes = [8, 16], strides = [1, 1]} : vector<8x18xf32> to vector<8x16xf32>
    %c6 = arith.constant 6 : index
    %96 = memref.load %arg2[%c6] : memref<108xf32, #tpu.memory_space<smem>>
    %97 = vector.broadcast %96 : f32 to vector<8x16xf32>
    %98 = arith.mulf %97, %95 : vector<8x16xf32>
    %99 = arith.addf %82, %98 : vector<8x16xf32>
    %c42 = arith.constant 42 : index
    %100 = memref.load %arg2[%c42] : memref<108xf32, #tpu.memory_space<smem>>
    %101 = vector.broadcast %100 : f32 to vector<8x16xf32>
    %102 = arith.mulf %101, %95 : vector<8x16xf32>
    %103 = arith.addf %86, %102 : vector<8x16xf32>
    %c78 = arith.constant 78 : index
    %104 = memref.load %arg2[%c78] : memref<108xf32, #tpu.memory_space<smem>>
    %105 = vector.broadcast %104 : f32 to vector<8x16xf32>
    %106 = arith.mulf %105, %95 : vector<8x16xf32>
    %107 = arith.addf %90, %106 : vector<8x16xf32>
    %108 = vector.extract_strided_slice %94 {offsets = [0, 1], sizes = [8, 16], strides = [1, 1]} : vector<8x18xf32> to vector<8x16xf32>
    %c7 = arith.constant 7 : index
    %109 = memref.load %arg2[%c7] : memref<108xf32, #tpu.memory_space<smem>>
    %110 = vector.broadcast %109 : f32 to vector<8x16xf32>
    %111 = arith.mulf %110, %108 : vector<8x16xf32>
    %112 = arith.addf %99, %111 : vector<8x16xf32>
    %c43 = arith.constant 43 : index
    %113 = memref.load %arg2[%c43] : memref<108xf32, #tpu.memory_space<smem>>
    %114 = vector.broadcast %113 : f32 to vector<8x16xf32>
    %115 = arith.mulf %114, %108 : vector<8x16xf32>
    %116 = arith.addf %103, %115 : vector<8x16xf32>
    %c79 = arith.constant 79 : index
    %117 = memref.load %arg2[%c79] : memref<108xf32, #tpu.memory_space<smem>>
    %118 = vector.broadcast %117 : f32 to vector<8x16xf32>
    %119 = arith.mulf %118, %108 : vector<8x16xf32>
    %120 = arith.addf %107, %119 : vector<8x16xf32>
    %121 = vector.extract_strided_slice %94 {offsets = [0, 2], sizes = [8, 16], strides = [1, 1]} : vector<8x18xf32> to vector<8x16xf32>
    %c8 = arith.constant 8 : index
    %122 = memref.load %arg2[%c8] : memref<108xf32, #tpu.memory_space<smem>>
    %123 = vector.broadcast %122 : f32 to vector<8x16xf32>
    %124 = arith.mulf %123, %121 : vector<8x16xf32>
    %125 = arith.addf %112, %124 : vector<8x16xf32>
    %c44 = arith.constant 44 : index
    %126 = memref.load %arg2[%c44] : memref<108xf32, #tpu.memory_space<smem>>
    %127 = vector.broadcast %126 : f32 to vector<8x16xf32>
    %128 = arith.mulf %127, %121 : vector<8x16xf32>
    %129 = arith.addf %116, %128 : vector<8x16xf32>
    %c80 = arith.constant 80 : index
    %130 = memref.load %arg2[%c80] : memref<108xf32, #tpu.memory_space<smem>>
    %131 = vector.broadcast %130 : f32 to vector<8x16xf32>
    %132 = arith.mulf %131, %121 : vector<8x16xf32>
    %133 = arith.addf %120, %132 : vector<8x16xf32>
    %c0_i32_11 = arith.constant 0 : i32
    %134 = arith.addi %1, %c0_i32_11 : i32
    %c0_12 = arith.constant 0 : index
    %c1_13 = arith.constant 1 : index
    %135 = arith.index_cast %134 : i32 to index
    %c0_14 = arith.constant 0 : index
    %136 = vector.load %arg3[%c0_12, %c1_13, %135, %c0_14] : memref<1x4x18x18xf32, #tpu.memory_space<vmem>>, vector<1x1x8x18xf32>
    %137 = vector.shape_cast %136 : vector<1x1x8x18xf32> to vector<8x18xf32>
    %138 = vector.extract_strided_slice %137 {offsets = [0, 0], sizes = [8, 16], strides = [1, 1]} : vector<8x18xf32> to vector<8x16xf32>
    %c9 = arith.constant 9 : index
    %139 = memref.load %arg2[%c9] : memref<108xf32, #tpu.memory_space<smem>>
    %140 = vector.broadcast %139 : f32 to vector<8x16xf32>
    %141 = arith.mulf %140, %138 : vector<8x16xf32>
    %142 = arith.addf %125, %141 : vector<8x16xf32>
    %c45 = arith.constant 45 : index
    %143 = memref.load %arg2[%c45] : memref<108xf32, #tpu.memory_space<smem>>
    %144 = vector.broadcast %143 : f32 to vector<8x16xf32>
    %145 = arith.mulf %144, %138 : vector<8x16xf32>
    %146 = arith.addf %129, %145 : vector<8x16xf32>
    %c81 = arith.constant 81 : index
    %147 = memref.load %arg2[%c81] : memref<108xf32, #tpu.memory_space<smem>>
    %148 = vector.broadcast %147 : f32 to vector<8x16xf32>
    %149 = arith.mulf %148, %138 : vector<8x16xf32>
    %150 = arith.addf %133, %149 : vector<8x16xf32>
    %151 = vector.extract_strided_slice %137 {offsets = [0, 1], sizes = [8, 16], strides = [1, 1]} : vector<8x18xf32> to vector<8x16xf32>
    %c10 = arith.constant 10 : index
    %152 = memref.load %arg2[%c10] : memref<108xf32, #tpu.memory_space<smem>>
    %153 = vector.broadcast %152 : f32 to vector<8x16xf32>
    %154 = arith.mulf %153, %151 : vector<8x16xf32>
    %155 = arith.addf %142, %154 : vector<8x16xf32>
    %c46 = arith.constant 46 : index
    %156 = memref.load %arg2[%c46] : memref<108xf32, #tpu.memory_space<smem>>
    %157 = vector.broadcast %156 : f32 to vector<8x16xf32>
    %158 = arith.mulf %157, %151 : vector<8x16xf32>
    %159 = arith.addf %146, %158 : vector<8x16xf32>
    %c82 = arith.constant 82 : index
    %160 = memref.load %arg2[%c82] : memref<108xf32, #tpu.memory_space<smem>>
    %161 = vector.broadcast %160 : f32 to vector<8x16xf32>
    %162 = arith.mulf %161, %151 : vector<8x16xf32>
    %163 = arith.addf %150, %162 : vector<8x16xf32>
    %164 = vector.extract_strided_slice %137 {offsets = [0, 2], sizes = [8, 16], strides = [1, 1]} : vector<8x18xf32> to vector<8x16xf32>
    %c11 = arith.constant 11 : index
    %165 = memref.load %arg2[%c11] : memref<108xf32, #tpu.memory_space<smem>>
    %166 = vector.broadcast %165 : f32 to vector<8x16xf32>
    %167 = arith.mulf %166, %164 : vector<8x16xf32>
    %168 = arith.addf %155, %167 : vector<8x16xf32>
    %c47 = arith.constant 47 : index
    %169 = memref.load %arg2[%c47] : memref<108xf32, #tpu.memory_space<smem>>
    %170 = vector.broadcast %169 : f32 to vector<8x16xf32>
    %171 = arith.mulf %170, %164 : vector<8x16xf32>
    %172 = arith.addf %159, %171 : vector<8x16xf32>
    %c83 = arith.constant 83 : index
    %173 = memref.load %arg2[%c83] : memref<108xf32, #tpu.memory_space<smem>>
    %174 = vector.broadcast %173 : f32 to vector<8x16xf32>
    %175 = arith.mulf %174, %164 : vector<8x16xf32>
    %176 = arith.addf %163, %175 : vector<8x16xf32>
    %c1_i32_15 = arith.constant 1 : i32
    %177 = arith.addi %1, %c1_i32_15 : i32
    %c0_16 = arith.constant 0 : index
    %c1_17 = arith.constant 1 : index
    %178 = arith.index_cast %177 : i32 to index
    %c0_18 = arith.constant 0 : index
    %179 = vector.load %arg3[%c0_16, %c1_17, %178, %c0_18] : memref<1x4x18x18xf32, #tpu.memory_space<vmem>>, vector<1x1x8x18xf32>
    %180 = vector.shape_cast %179 : vector<1x1x8x18xf32> to vector<8x18xf32>
    %181 = vector.extract_strided_slice %180 {offsets = [0, 0], sizes = [8, 16], strides = [1, 1]} : vector<8x18xf32> to vector<8x16xf32>
    %c12 = arith.constant 12 : index
    %182 = memref.load %arg2[%c12] : memref<108xf32, #tpu.memory_space<smem>>
    %183 = vector.broadcast %182 : f32 to vector<8x16xf32>
    %184 = arith.mulf %183, %181 : vector<8x16xf32>
    %185 = arith.addf %168, %184 : vector<8x16xf32>
    %c48 = arith.constant 48 : index
    %186 = memref.load %arg2[%c48] : memref<108xf32, #tpu.memory_space<smem>>
    %187 = vector.broadcast %186 : f32 to vector<8x16xf32>
    %188 = arith.mulf %187, %181 : vector<8x16xf32>
    %189 = arith.addf %172, %188 : vector<8x16xf32>
    %c84 = arith.constant 84 : index
    %190 = memref.load %arg2[%c84] : memref<108xf32, #tpu.memory_space<smem>>
    %191 = vector.broadcast %190 : f32 to vector<8x16xf32>
    %192 = arith.mulf %191, %181 : vector<8x16xf32>
    %193 = arith.addf %176, %192 : vector<8x16xf32>
    %194 = vector.extract_strided_slice %180 {offsets = [0, 1], sizes = [8, 16], strides = [1, 1]} : vector<8x18xf32> to vector<8x16xf32>
    %c13 = arith.constant 13 : index
    %195 = memref.load %arg2[%c13] : memref<108xf32, #tpu.memory_space<smem>>
    %196 = vector.broadcast %195 : f32 to vector<8x16xf32>
    %197 = arith.mulf %196, %194 : vector<8x16xf32>
    %198 = arith.addf %185, %197 : vector<8x16xf32>
    %c49 = arith.constant 49 : index
    %199 = memref.load %arg2[%c49] : memref<108xf32, #tpu.memory_space<smem>>
    %200 = vector.broadcast %199 : f32 to vector<8x16xf32>
    %201 = arith.mulf %200, %194 : vector<8x16xf32>
    %202 = arith.addf %189, %201 : vector<8x16xf32>
    %c85 = arith.constant 85 : index
    %203 = memref.load %arg2[%c85] : memref<108xf32, #tpu.memory_space<smem>>
    %204 = vector.broadcast %203 : f32 to vector<8x16xf32>
    %205 = arith.mulf %204, %194 : vector<8x16xf32>
    %206 = arith.addf %193, %205 : vector<8x16xf32>
    %207 = vector.extract_strided_slice %180 {offsets = [0, 2], sizes = [8, 16], strides = [1, 1]} : vector<8x18xf32> to vector<8x16xf32>
    %c14 = arith.constant 14 : index
    %208 = memref.load %arg2[%c14] : memref<108xf32, #tpu.memory_space<smem>>
    %209 = vector.broadcast %208 : f32 to vector<8x16xf32>
    %210 = arith.mulf %209, %207 : vector<8x16xf32>
    %211 = arith.addf %198, %210 : vector<8x16xf32>
    %c50 = arith.constant 50 : index
    %212 = memref.load %arg2[%c50] : memref<108xf32, #tpu.memory_space<smem>>
    %213 = vector.broadcast %212 : f32 to vector<8x16xf32>
    %214 = arith.mulf %213, %207 : vector<8x16xf32>
    %215 = arith.addf %202, %214 : vector<8x16xf32>
    %c86 = arith.constant 86 : index
    %216 = memref.load %arg2[%c86] : memref<108xf32, #tpu.memory_space<smem>>
    %217 = vector.broadcast %216 : f32 to vector<8x16xf32>
    %218 = arith.mulf %217, %207 : vector<8x16xf32>
    %219 = arith.addf %206, %218 : vector<8x16xf32>
    %c2_i32_19 = arith.constant 2 : i32
    %220 = arith.addi %1, %c2_i32_19 : i32
    %c0_20 = arith.constant 0 : index
    %c1_21 = arith.constant 1 : index
    %221 = arith.index_cast %220 : i32 to index
    %c0_22 = arith.constant 0 : index
    %222 = vector.load %arg3[%c0_20, %c1_21, %221, %c0_22] : memref<1x4x18x18xf32, #tpu.memory_space<vmem>>, vector<1x1x8x18xf32>
    %223 = vector.shape_cast %222 : vector<1x1x8x18xf32> to vector<8x18xf32>
    %224 = vector.extract_strided_slice %223 {offsets = [0, 0], sizes = [8, 16], strides = [1, 1]} : vector<8x18xf32> to vector<8x16xf32>
    %c15 = arith.constant 15 : index
    %225 = memref.load %arg2[%c15] : memref<108xf32, #tpu.memory_space<smem>>
    %226 = vector.broadcast %225 : f32 to vector<8x16xf32>
    %227 = arith.mulf %226, %224 : vector<8x16xf32>
    %228 = arith.addf %211, %227 : vector<8x16xf32>
    %c51 = arith.constant 51 : index
    %229 = memref.load %arg2[%c51] : memref<108xf32, #tpu.memory_space<smem>>
    %230 = vector.broadcast %229 : f32 to vector<8x16xf32>
    %231 = arith.mulf %230, %224 : vector<8x16xf32>
    %232 = arith.addf %215, %231 : vector<8x16xf32>
    %c87 = arith.constant 87 : index
    %233 = memref.load %arg2[%c87] : memref<108xf32, #tpu.memory_space<smem>>
    %234 = vector.broadcast %233 : f32 to vector<8x16xf32>
    %235 = arith.mulf %234, %224 : vector<8x16xf32>
    %236 = arith.addf %219, %235 : vector<8x16xf32>
    %237 = vector.extract_strided_slice %223 {offsets = [0, 1], sizes = [8, 16], strides = [1, 1]} : vector<8x18xf32> to vector<8x16xf32>
    %c16 = arith.constant 16 : index
    %238 = memref.load %arg2[%c16] : memref<108xf32, #tpu.memory_space<smem>>
    %239 = vector.broadcast %238 : f32 to vector<8x16xf32>
    %240 = arith.mulf %239, %237 : vector<8x16xf32>
    %241 = arith.addf %228, %240 : vector<8x16xf32>
    %c52 = arith.constant 52 : index
    %242 = memref.load %arg2[%c52] : memref<108xf32, #tpu.memory_space<smem>>
    %243 = vector.broadcast %242 : f32 to vector<8x16xf32>
    %244 = arith.mulf %243, %237 : vector<8x16xf32>
    %245 = arith.addf %232, %244 : vector<8x16xf32>
    %c88 = arith.constant 88 : index
    %246 = memref.load %arg2[%c88] : memref<108xf32, #tpu.memory_space<smem>>
    %247 = vector.broadcast %246 : f32 to vector<8x16xf32>
    %248 = arith.mulf %247, %237 : vector<8x16xf32>
    %249 = arith.addf %236, %248 : vector<8x16xf32>
    %250 = vector.extract_strided_slice %223 {offsets = [0, 2], sizes = [8, 16], strides = [1, 1]} : vector<8x18xf32> to vector<8x16xf32>
    %c17 = arith.constant 17 : index
    %251 = memref.load %arg2[%c17] : memref<108xf32, #tpu.memory_space<smem>>
    %252 = vector.broadcast %251 : f32 to vector<8x16xf32>
    %253 = arith.mulf %252, %250 : vector<8x16xf32>
    %254 = arith.addf %241, %253 : vector<8x16xf32>
    %c53 = arith.constant 53 : index
    %255 = memref.load %arg2[%c53] : memref<108xf32, #tpu.memory_space<smem>>
    %256 = vector.broadcast %255 : f32 to vector<8x16xf32>
    %257 = arith.mulf %256, %250 : vector<8x16xf32>
    %258 = arith.addf %245, %257 : vector<8x16xf32>
    %c89 = arith.constant 89 : index
    %259 = memref.load %arg2[%c89] : memref<108xf32, #tpu.memory_space<smem>>
    %260 = vector.broadcast %259 : f32 to vector<8x16xf32>
    %261 = arith.mulf %260, %250 : vector<8x16xf32>
    %262 = arith.addf %249, %261 : vector<8x16xf32>
    %c0_i32_23 = arith.constant 0 : i32
    %263 = arith.addi %1, %c0_i32_23 : i32
    %c0_24 = arith.constant 0 : index
    %c2_25 = arith.constant 2 : index
    %264 = arith.index_cast %263 : i32 to index
    %c0_26 = arith.constant 0 : index
    %265 = vector.load %arg3[%c0_24, %c2_25, %264, %c0_26] : memref<1x4x18x18xf32, #tpu.memory_space<vmem>>, vector<1x1x8x18xf32>
    %266 = vector.shape_cast %265 : vector<1x1x8x18xf32> to vector<8x18xf32>
    %267 = vector.extract_strided_slice %266 {offsets = [0, 0], sizes = [8, 16], strides = [1, 1]} : vector<8x18xf32> to vector<8x16xf32>
    %c18 = arith.constant 18 : index
    %268 = memref.load %arg2[%c18] : memref<108xf32, #tpu.memory_space<smem>>
    %269 = vector.broadcast %268 : f32 to vector<8x16xf32>
    %270 = arith.mulf %269, %267 : vector<8x16xf32>
    %271 = arith.addf %254, %270 : vector<8x16xf32>
    %c54 = arith.constant 54 : index
    %272 = memref.load %arg2[%c54] : memref<108xf32, #tpu.memory_space<smem>>
    %273 = vector.broadcast %272 : f32 to vector<8x16xf32>
    %274 = arith.mulf %273, %267 : vector<8x16xf32>
    %275 = arith.addf %258, %274 : vector<8x16xf32>
    %c90 = arith.constant 90 : index
    %276 = memref.load %arg2[%c90] : memref<108xf32, #tpu.memory_space<smem>>
    %277 = vector.broadcast %276 : f32 to vector<8x16xf32>
    %278 = arith.mulf %277, %267 : vector<8x16xf32>
    %279 = arith.addf %262, %278 : vector<8x16xf32>
    %280 = vector.extract_strided_slice %266 {offsets = [0, 1], sizes = [8, 16], strides = [1, 1]} : vector<8x18xf32> to vector<8x16xf32>
    %c19 = arith.constant 19 : index
    %281 = memref.load %arg2[%c19] : memref<108xf32, #tpu.memory_space<smem>>
    %282 = vector.broadcast %281 : f32 to vector<8x16xf32>
    %283 = arith.mulf %282, %280 : vector<8x16xf32>
    %284 = arith.addf %271, %283 : vector<8x16xf32>
    %c55 = arith.constant 55 : index
    %285 = memref.load %arg2[%c55] : memref<108xf32, #tpu.memory_space<smem>>
    %286 = vector.broadcast %285 : f32 to vector<8x16xf32>
    %287 = arith.mulf %286, %280 : vector<8x16xf32>
    %288 = arith.addf %275, %287 : vector<8x16xf32>
    %c91 = arith.constant 91 : index
    %289 = memref.load %arg2[%c91] : memref<108xf32, #tpu.memory_space<smem>>
    %290 = vector.broadcast %289 : f32 to vector<8x16xf32>
    %291 = arith.mulf %290, %280 : vector<8x16xf32>
    %292 = arith.addf %279, %291 : vector<8x16xf32>
    %293 = vector.extract_strided_slice %266 {offsets = [0, 2], sizes = [8, 16], strides = [1, 1]} : vector<8x18xf32> to vector<8x16xf32>
    %c20 = arith.constant 20 : index
    %294 = memref.load %arg2[%c20] : memref<108xf32, #tpu.memory_space<smem>>
    %295 = vector.broadcast %294 : f32 to vector<8x16xf32>
    %296 = arith.mulf %295, %293 : vector<8x16xf32>
    %297 = arith.addf %284, %296 : vector<8x16xf32>
    %c56 = arith.constant 56 : index
    %298 = memref.load %arg2[%c56] : memref<108xf32, #tpu.memory_space<smem>>
    %299 = vector.broadcast %298 : f32 to vector<8x16xf32>
    %300 = arith.mulf %299, %293 : vector<8x16xf32>
    %301 = arith.addf %288, %300 : vector<8x16xf32>
    %c92 = arith.constant 92 : index
    %302 = memref.load %arg2[%c92] : memref<108xf32, #tpu.memory_space<smem>>
    %303 = vector.broadcast %302 : f32 to vector<8x16xf32>
    %304 = arith.mulf %303, %293 : vector<8x16xf32>
    %305 = arith.addf %292, %304 : vector<8x16xf32>
    %c1_i32_27 = arith.constant 1 : i32
    %306 = arith.addi %1, %c1_i32_27 : i32
    %c0_28 = arith.constant 0 : index
    %c2_29 = arith.constant 2 : index
    %307 = arith.index_cast %306 : i32 to index
    %c0_30 = arith.constant 0 : index
    %308 = vector.load %arg3[%c0_28, %c2_29, %307, %c0_30] : memref<1x4x18x18xf32, #tpu.memory_space<vmem>>, vector<1x1x8x18xf32>
    %309 = vector.shape_cast %308 : vector<1x1x8x18xf32> to vector<8x18xf32>
    %310 = vector.extract_strided_slice %309 {offsets = [0, 0], sizes = [8, 16], strides = [1, 1]} : vector<8x18xf32> to vector<8x16xf32>
    %c21 = arith.constant 21 : index
    %311 = memref.load %arg2[%c21] : memref<108xf32, #tpu.memory_space<smem>>
    %312 = vector.broadcast %311 : f32 to vector<8x16xf32>
    %313 = arith.mulf %312, %310 : vector<8x16xf32>
    %314 = arith.addf %297, %313 : vector<8x16xf32>
    %c57 = arith.constant 57 : index
    %315 = memref.load %arg2[%c57] : memref<108xf32, #tpu.memory_space<smem>>
    %316 = vector.broadcast %315 : f32 to vector<8x16xf32>
    %317 = arith.mulf %316, %310 : vector<8x16xf32>
    %318 = arith.addf %301, %317 : vector<8x16xf32>
    %c93 = arith.constant 93 : index
    %319 = memref.load %arg2[%c93] : memref<108xf32, #tpu.memory_space<smem>>
    %320 = vector.broadcast %319 : f32 to vector<8x16xf32>
    %321 = arith.mulf %320, %310 : vector<8x16xf32>
    %322 = arith.addf %305, %321 : vector<8x16xf32>
    %323 = vector.extract_strided_slice %309 {offsets = [0, 1], sizes = [8, 16], strides = [1, 1]} : vector<8x18xf32> to vector<8x16xf32>
    %c22 = arith.constant 22 : index
    %324 = memref.load %arg2[%c22] : memref<108xf32, #tpu.memory_space<smem>>
    %325 = vector.broadcast %324 : f32 to vector<8x16xf32>
    %326 = arith.mulf %325, %323 : vector<8x16xf32>
    %327 = arith.addf %314, %326 : vector<8x16xf32>
    %c58 = arith.constant 58 : index
    %328 = memref.load %arg2[%c58] : memref<108xf32, #tpu.memory_space<smem>>
    %329 = vector.broadcast %328 : f32 to vector<8x16xf32>
    %330 = arith.mulf %329, %323 : vector<8x16xf32>
    %331 = arith.addf %318, %330 : vector<8x16xf32>
    %c94 = arith.constant 94 : index
    %332 = memref.load %arg2[%c94] : memref<108xf32, #tpu.memory_space<smem>>
    %333 = vector.broadcast %332 : f32 to vector<8x16xf32>
    %334 = arith.mulf %333, %323 : vector<8x16xf32>
    %335 = arith.addf %322, %334 : vector<8x16xf32>
    %336 = vector.extract_strided_slice %309 {offsets = [0, 2], sizes = [8, 16], strides = [1, 1]} : vector<8x18xf32> to vector<8x16xf32>
    %c23 = arith.constant 23 : index
    %337 = memref.load %arg2[%c23] : memref<108xf32, #tpu.memory_space<smem>>
    %338 = vector.broadcast %337 : f32 to vector<8x16xf32>
    %339 = arith.mulf %338, %336 : vector<8x16xf32>
    %340 = arith.addf %327, %339 : vector<8x16xf32>
    %c59 = arith.constant 59 : index
    %341 = memref.load %arg2[%c59] : memref<108xf32, #tpu.memory_space<smem>>
    %342 = vector.broadcast %341 : f32 to vector<8x16xf32>
    %343 = arith.mulf %342, %336 : vector<8x16xf32>
    %344 = arith.addf %331, %343 : vector<8x16xf32>
    %c95 = arith.constant 95 : index
    %345 = memref.load %arg2[%c95] : memref<108xf32, #tpu.memory_space<smem>>
    %346 = vector.broadcast %345 : f32 to vector<8x16xf32>
    %347 = arith.mulf %346, %336 : vector<8x16xf32>
    %348 = arith.addf %335, %347 : vector<8x16xf32>
    %c2_i32_31 = arith.constant 2 : i32
    %349 = arith.addi %1, %c2_i32_31 : i32
    %c0_32 = arith.constant 0 : index
    %c2_33 = arith.constant 2 : index
    %350 = arith.index_cast %349 : i32 to index
    %c0_34 = arith.constant 0 : index
    %351 = vector.load %arg3[%c0_32, %c2_33, %350, %c0_34] : memref<1x4x18x18xf32, #tpu.memory_space<vmem>>, vector<1x1x8x18xf32>
    %352 = vector.shape_cast %351 : vector<1x1x8x18xf32> to vector<8x18xf32>
    %353 = vector.extract_strided_slice %352 {offsets = [0, 0], sizes = [8, 16], strides = [1, 1]} : vector<8x18xf32> to vector<8x16xf32>
    %c24 = arith.constant 24 : index
    %354 = memref.load %arg2[%c24] : memref<108xf32, #tpu.memory_space<smem>>
    %355 = vector.broadcast %354 : f32 to vector<8x16xf32>
    %356 = arith.mulf %355, %353 : vector<8x16xf32>
    %357 = arith.addf %340, %356 : vector<8x16xf32>
    %c60 = arith.constant 60 : index
    %358 = memref.load %arg2[%c60] : memref<108xf32, #tpu.memory_space<smem>>
    %359 = vector.broadcast %358 : f32 to vector<8x16xf32>
    %360 = arith.mulf %359, %353 : vector<8x16xf32>
    %361 = arith.addf %344, %360 : vector<8x16xf32>
    %c96 = arith.constant 96 : index
    %362 = memref.load %arg2[%c96] : memref<108xf32, #tpu.memory_space<smem>>
    %363 = vector.broadcast %362 : f32 to vector<8x16xf32>
    %364 = arith.mulf %363, %353 : vector<8x16xf32>
    %365 = arith.addf %348, %364 : vector<8x16xf32>
    %366 = vector.extract_strided_slice %352 {offsets = [0, 1], sizes = [8, 16], strides = [1, 1]} : vector<8x18xf32> to vector<8x16xf32>
    %c25 = arith.constant 25 : index
    %367 = memref.load %arg2[%c25] : memref<108xf32, #tpu.memory_space<smem>>
    %368 = vector.broadcast %367 : f32 to vector<8x16xf32>
    %369 = arith.mulf %368, %366 : vector<8x16xf32>
    %370 = arith.addf %357, %369 : vector<8x16xf32>
    %c61 = arith.constant 61 : index
    %371 = memref.load %arg2[%c61] : memref<108xf32, #tpu.memory_space<smem>>
    %372 = vector.broadcast %371 : f32 to vector<8x16xf32>
    %373 = arith.mulf %372, %366 : vector<8x16xf32>
    %374 = arith.addf %361, %373 : vector<8x16xf32>
    %c97 = arith.constant 97 : index
    %375 = memref.load %arg2[%c97] : memref<108xf32, #tpu.memory_space<smem>>
    %376 = vector.broadcast %375 : f32 to vector<8x16xf32>
    %377 = arith.mulf %376, %366 : vector<8x16xf32>
    %378 = arith.addf %365, %377 : vector<8x16xf32>
    %379 = vector.extract_strided_slice %352 {offsets = [0, 2], sizes = [8, 16], strides = [1, 1]} : vector<8x18xf32> to vector<8x16xf32>
    %c26 = arith.constant 26 : index
    %380 = memref.load %arg2[%c26] : memref<108xf32, #tpu.memory_space<smem>>
    %381 = vector.broadcast %380 : f32 to vector<8x16xf32>
    %382 = arith.mulf %381, %379 : vector<8x16xf32>
    %383 = arith.addf %370, %382 : vector<8x16xf32>
    %c62 = arith.constant 62 : index
    %384 = memref.load %arg2[%c62] : memref<108xf32, #tpu.memory_space<smem>>
    %385 = vector.broadcast %384 : f32 to vector<8x16xf32>
    %386 = arith.mulf %385, %379 : vector<8x16xf32>
    %387 = arith.addf %374, %386 : vector<8x16xf32>
    %c98 = arith.constant 98 : index
    %388 = memref.load %arg2[%c98] : memref<108xf32, #tpu.memory_space<smem>>
    %389 = vector.broadcast %388 : f32 to vector<8x16xf32>
    %390 = arith.mulf %389, %379 : vector<8x16xf32>
    %391 = arith.addf %378, %390 : vector<8x16xf32>
    %c0_i32_35 = arith.constant 0 : i32
    %392 = arith.addi %1, %c0_i32_35 : i32
    %c0_36 = arith.constant 0 : index
    %c3_37 = arith.constant 3 : index
    %393 = arith.index_cast %392 : i32 to index
    %c0_38 = arith.constant 0 : index
    %394 = vector.load %arg3[%c0_36, %c3_37, %393, %c0_38] : memref<1x4x18x18xf32, #tpu.memory_space<vmem>>, vector<1x1x8x18xf32>
    %395 = vector.shape_cast %394 : vector<1x1x8x18xf32> to vector<8x18xf32>
    %396 = vector.extract_strided_slice %395 {offsets = [0, 0], sizes = [8, 16], strides = [1, 1]} : vector<8x18xf32> to vector<8x16xf32>
    %c27 = arith.constant 27 : index
    %397 = memref.load %arg2[%c27] : memref<108xf32, #tpu.memory_space<smem>>
    %398 = vector.broadcast %397 : f32 to vector<8x16xf32>
    %399 = arith.mulf %398, %396 : vector<8x16xf32>
    %400 = arith.addf %383, %399 : vector<8x16xf32>
    %c63 = arith.constant 63 : index
    %401 = memref.load %arg2[%c63] : memref<108xf32, #tpu.memory_space<smem>>
    %402 = vector.broadcast %401 : f32 to vector<8x16xf32>
    %403 = arith.mulf %402, %396 : vector<8x16xf32>
    %404 = arith.addf %387, %403 : vector<8x16xf32>
    %c99 = arith.constant 99 : index
    %405 = memref.load %arg2[%c99] : memref<108xf32, #tpu.memory_space<smem>>
    %406 = vector.broadcast %405 : f32 to vector<8x16xf32>
    %407 = arith.mulf %406, %396 : vector<8x16xf32>
    %408 = arith.addf %391, %407 : vector<8x16xf32>
    %409 = vector.extract_strided_slice %395 {offsets = [0, 1], sizes = [8, 16], strides = [1, 1]} : vector<8x18xf32> to vector<8x16xf32>
    %c28 = arith.constant 28 : index
    %410 = memref.load %arg2[%c28] : memref<108xf32, #tpu.memory_space<smem>>
    %411 = vector.broadcast %410 : f32 to vector<8x16xf32>
    %412 = arith.mulf %411, %409 : vector<8x16xf32>
    %413 = arith.addf %400, %412 : vector<8x16xf32>
    %c64 = arith.constant 64 : index
    %414 = memref.load %arg2[%c64] : memref<108xf32, #tpu.memory_space<smem>>
    %415 = vector.broadcast %414 : f32 to vector<8x16xf32>
    %416 = arith.mulf %415, %409 : vector<8x16xf32>
    %417 = arith.addf %404, %416 : vector<8x16xf32>
    %c100 = arith.constant 100 : index
    %418 = memref.load %arg2[%c100] : memref<108xf32, #tpu.memory_space<smem>>
    %419 = vector.broadcast %418 : f32 to vector<8x16xf32>
    %420 = arith.mulf %419, %409 : vector<8x16xf32>
    %421 = arith.addf %408, %420 : vector<8x16xf32>
    %422 = vector.extract_strided_slice %395 {offsets = [0, 2], sizes = [8, 16], strides = [1, 1]} : vector<8x18xf32> to vector<8x16xf32>
    %c29 = arith.constant 29 : index
    %423 = memref.load %arg2[%c29] : memref<108xf32, #tpu.memory_space<smem>>
    %424 = vector.broadcast %423 : f32 to vector<8x16xf32>
    %425 = arith.mulf %424, %422 : vector<8x16xf32>
    %426 = arith.addf %413, %425 : vector<8x16xf32>
    %c65 = arith.constant 65 : index
    %427 = memref.load %arg2[%c65] : memref<108xf32, #tpu.memory_space<smem>>
    %428 = vector.broadcast %427 : f32 to vector<8x16xf32>
    %429 = arith.mulf %428, %422 : vector<8x16xf32>
    %430 = arith.addf %417, %429 : vector<8x16xf32>
    %c101 = arith.constant 101 : index
    %431 = memref.load %arg2[%c101] : memref<108xf32, #tpu.memory_space<smem>>
    %432 = vector.broadcast %431 : f32 to vector<8x16xf32>
    %433 = arith.mulf %432, %422 : vector<8x16xf32>
    %434 = arith.addf %421, %433 : vector<8x16xf32>
    %c1_i32_39 = arith.constant 1 : i32
    %435 = arith.addi %1, %c1_i32_39 : i32
    %c0_40 = arith.constant 0 : index
    %c3_41 = arith.constant 3 : index
    %436 = arith.index_cast %435 : i32 to index
    %c0_42 = arith.constant 0 : index
    %437 = vector.load %arg3[%c0_40, %c3_41, %436, %c0_42] : memref<1x4x18x18xf32, #tpu.memory_space<vmem>>, vector<1x1x8x18xf32>
    %438 = vector.shape_cast %437 : vector<1x1x8x18xf32> to vector<8x18xf32>
    %439 = vector.extract_strided_slice %438 {offsets = [0, 0], sizes = [8, 16], strides = [1, 1]} : vector<8x18xf32> to vector<8x16xf32>
    %c30 = arith.constant 30 : index
    %440 = memref.load %arg2[%c30] : memref<108xf32, #tpu.memory_space<smem>>
    %441 = vector.broadcast %440 : f32 to vector<8x16xf32>
    %442 = arith.mulf %441, %439 : vector<8x16xf32>
    %443 = arith.addf %426, %442 : vector<8x16xf32>
    %c66 = arith.constant 66 : index
    %444 = memref.load %arg2[%c66] : memref<108xf32, #tpu.memory_space<smem>>
    %445 = vector.broadcast %444 : f32 to vector<8x16xf32>
    %446 = arith.mulf %445, %439 : vector<8x16xf32>
    %447 = arith.addf %430, %446 : vector<8x16xf32>
    %c102 = arith.constant 102 : index
    %448 = memref.load %arg2[%c102] : memref<108xf32, #tpu.memory_space<smem>>
    %449 = vector.broadcast %448 : f32 to vector<8x16xf32>
    %450 = arith.mulf %449, %439 : vector<8x16xf32>
    %451 = arith.addf %434, %450 : vector<8x16xf32>
    %452 = vector.extract_strided_slice %438 {offsets = [0, 1], sizes = [8, 16], strides = [1, 1]} : vector<8x18xf32> to vector<8x16xf32>
    %c31 = arith.constant 31 : index
    %453 = memref.load %arg2[%c31] : memref<108xf32, #tpu.memory_space<smem>>
    %454 = vector.broadcast %453 : f32 to vector<8x16xf32>
    %455 = arith.mulf %454, %452 : vector<8x16xf32>
    %456 = arith.addf %443, %455 : vector<8x16xf32>
    %c67 = arith.constant 67 : index
    %457 = memref.load %arg2[%c67] : memref<108xf32, #tpu.memory_space<smem>>
    %458 = vector.broadcast %457 : f32 to vector<8x16xf32>
    %459 = arith.mulf %458, %452 : vector<8x16xf32>
    %460 = arith.addf %447, %459 : vector<8x16xf32>
    %c103 = arith.constant 103 : index
    %461 = memref.load %arg2[%c103] : memref<108xf32, #tpu.memory_space<smem>>
    %462 = vector.broadcast %461 : f32 to vector<8x16xf32>
    %463 = arith.mulf %462, %452 : vector<8x16xf32>
    %464 = arith.addf %451, %463 : vector<8x16xf32>
    %465 = vector.extract_strided_slice %438 {offsets = [0, 2], sizes = [8, 16], strides = [1, 1]} : vector<8x18xf32> to vector<8x16xf32>
    %c32 = arith.constant 32 : index
    %466 = memref.load %arg2[%c32] : memref<108xf32, #tpu.memory_space<smem>>
    %467 = vector.broadcast %466 : f32 to vector<8x16xf32>
    %468 = arith.mulf %467, %465 : vector<8x16xf32>
    %469 = arith.addf %456, %468 : vector<8x16xf32>
    %c68 = arith.constant 68 : index
    %470 = memref.load %arg2[%c68] : memref<108xf32, #tpu.memory_space<smem>>
    %471 = vector.broadcast %470 : f32 to vector<8x16xf32>
    %472 = arith.mulf %471, %465 : vector<8x16xf32>
    %473 = arith.addf %460, %472 : vector<8x16xf32>
    %c104 = arith.constant 104 : index
    %474 = memref.load %arg2[%c104] : memref<108xf32, #tpu.memory_space<smem>>
    %475 = vector.broadcast %474 : f32 to vector<8x16xf32>
    %476 = arith.mulf %475, %465 : vector<8x16xf32>
    %477 = arith.addf %464, %476 : vector<8x16xf32>
    %c2_i32_43 = arith.constant 2 : i32
    %478 = arith.addi %1, %c2_i32_43 : i32
    %c0_44 = arith.constant 0 : index
    %c3_45 = arith.constant 3 : index
    %479 = arith.index_cast %478 : i32 to index
    %c0_46 = arith.constant 0 : index
    %480 = vector.load %arg3[%c0_44, %c3_45, %479, %c0_46] : memref<1x4x18x18xf32, #tpu.memory_space<vmem>>, vector<1x1x8x18xf32>
    %481 = vector.shape_cast %480 : vector<1x1x8x18xf32> to vector<8x18xf32>
    %482 = vector.extract_strided_slice %481 {offsets = [0, 0], sizes = [8, 16], strides = [1, 1]} : vector<8x18xf32> to vector<8x16xf32>
    %c33 = arith.constant 33 : index
    %483 = memref.load %arg2[%c33] : memref<108xf32, #tpu.memory_space<smem>>
    %484 = vector.broadcast %483 : f32 to vector<8x16xf32>
    %485 = arith.mulf %484, %482 : vector<8x16xf32>
    %486 = arith.addf %469, %485 : vector<8x16xf32>
    %c69 = arith.constant 69 : index
    %487 = memref.load %arg2[%c69] : memref<108xf32, #tpu.memory_space<smem>>
    %488 = vector.broadcast %487 : f32 to vector<8x16xf32>
    %489 = arith.mulf %488, %482 : vector<8x16xf32>
    %490 = arith.addf %473, %489 : vector<8x16xf32>
    %c105 = arith.constant 105 : index
    %491 = memref.load %arg2[%c105] : memref<108xf32, #tpu.memory_space<smem>>
    %492 = vector.broadcast %491 : f32 to vector<8x16xf32>
    %493 = arith.mulf %492, %482 : vector<8x16xf32>
    %494 = arith.addf %477, %493 : vector<8x16xf32>
    %495 = vector.extract_strided_slice %481 {offsets = [0, 1], sizes = [8, 16], strides = [1, 1]} : vector<8x18xf32> to vector<8x16xf32>
    %c34 = arith.constant 34 : index
    %496 = memref.load %arg2[%c34] : memref<108xf32, #tpu.memory_space<smem>>
    %497 = vector.broadcast %496 : f32 to vector<8x16xf32>
    %498 = arith.mulf %497, %495 : vector<8x16xf32>
    %499 = arith.addf %486, %498 : vector<8x16xf32>
    %c70 = arith.constant 70 : index
    %500 = memref.load %arg2[%c70] : memref<108xf32, #tpu.memory_space<smem>>
    %501 = vector.broadcast %500 : f32 to vector<8x16xf32>
    %502 = arith.mulf %501, %495 : vector<8x16xf32>
    %503 = arith.addf %490, %502 : vector<8x16xf32>
    %c106 = arith.constant 106 : index
    %504 = memref.load %arg2[%c106] : memref<108xf32, #tpu.memory_space<smem>>
    %505 = vector.broadcast %504 : f32 to vector<8x16xf32>
    %506 = arith.mulf %505, %495 : vector<8x16xf32>
    %507 = arith.addf %494, %506 : vector<8x16xf32>
    %508 = vector.extract_strided_slice %481 {offsets = [0, 2], sizes = [8, 16], strides = [1, 1]} : vector<8x18xf32> to vector<8x16xf32>
    %c35 = arith.constant 35 : index
    %509 = memref.load %arg2[%c35] : memref<108xf32, #tpu.memory_space<smem>>
    %510 = vector.broadcast %509 : f32 to vector<8x16xf32>
    %511 = arith.mulf %510, %508 : vector<8x16xf32>
    %512 = arith.addf %499, %511 : vector<8x16xf32>
    %c71 = arith.constant 71 : index
    %513 = memref.load %arg2[%c71] : memref<108xf32, #tpu.memory_space<smem>>
    %514 = vector.broadcast %513 : f32 to vector<8x16xf32>
    %515 = arith.mulf %514, %508 : vector<8x16xf32>
    %516 = arith.addf %503, %515 : vector<8x16xf32>
    %c107 = arith.constant 107 : index
    %517 = memref.load %arg2[%c107] : memref<108xf32, #tpu.memory_space<smem>>
    %518 = vector.broadcast %517 : f32 to vector<8x16xf32>
    %519 = arith.mulf %518, %508 : vector<8x16xf32>
    %520 = arith.addf %507, %519 : vector<8x16xf32>
    %521 = math.tanh %512 : vector<8x16xf32>
    %c0_47 = arith.constant 0 : index
    %c0_48 = arith.constant 0 : index
    %c0_49 = arith.constant 0 : index
    %c0_50 = arith.constant 0 : index
    %522 = vector.load %arg4[%c0_47, %c0_48, %c0_49, %c0_50] : memref<1x3x8x16xf32, #tpu.memory_space<vmem>>, vector<1x1x8x16xf32>
    %523 = vector.shape_cast %522 : vector<1x1x8x16xf32> to vector<8x16xf32>
    %524 = vector.shape_cast %521 : vector<8x16xf32> to vector<1x1x8x16xf32>
    tpu.vector_store %arg4[%c0_47, %c0_48, %c0_49, %c0_50], %524 {strides = array<i32>} : memref<1x3x8x16xf32, #tpu.memory_space<vmem>>, vector<1x1x8x16xf32>,
    %525 = math.tanh %516 : vector<8x16xf32>
    %c0_51 = arith.constant 0 : index
    %c1_52 = arith.constant 1 : index
    %c0_53 = arith.constant 0 : index
    %c0_54 = arith.constant 0 : index
    %526 = vector.load %arg4[%c0_51, %c1_52, %c0_53, %c0_54] : memref<1x3x8x16xf32, #tpu.memory_space<vmem>>, vector<1x1x8x16xf32>
    %527 = vector.shape_cast %526 : vector<1x1x8x16xf32> to vector<8x16xf32>
    %528 = vector.shape_cast %525 : vector<8x16xf32> to vector<1x1x8x16xf32>
    tpu.vector_store %arg4[%c0_51, %c1_52, %c0_53, %c0_54], %528 {strides = array<i32>} : memref<1x3x8x16xf32, #tpu.memory_space<vmem>>, vector<1x1x8x16xf32>,
    %529 = math.tanh %520 : vector<8x16xf32>
    %c0_55 = arith.constant 0 : index
    %c2_56 = arith.constant 2 : index
    %c0_57 = arith.constant 0 : index
    %c0_58 = arith.constant 0 : index
    %530 = vector.load %arg4[%c0_55, %c2_56, %c0_57, %c0_58] : memref<1x3x8x16xf32, #tpu.memory_space<vmem>>, vector<1x1x8x16xf32>
    %531 = vector.shape_cast %530 : vector<1x1x8x16xf32> to vector<8x16xf32>
    %532 = vector.shape_cast %529 : vector<8x16xf32> to vector<1x1x8x16xf32>
    tpu.vector_store %arg4[%c0_55, %c2_56, %c0_57, %c0_58], %532 {strides = array<i32>} : memref<1x3x8x16xf32, #tpu.memory_space<vmem>>, vector<1x1x8x16xf32>,
    return
  }
  func.func @transform_0(%arg0: i32, %arg1: i32) -> i32 {
    %c0_i32 = arith.constant 0 : i32
    %c0_i32_0 = arith.constant 0 : i32
    return %c0_i32 : i32
  }
  func.func @transform_1(%arg0: i32, %arg1: i32) -> (i32, i32, i32, i32) {
    %c0_i32 = arith.constant 0 : i32
    %c0_i32_0 = arith.constant 0 : i32
    %c0_i32_1 = arith.constant 0 : i32
    %c0_i32_2 = arith.constant 0 : i32
    return %arg0, %c0_i32, %c0_i32_0, %c0_i32_1 : i32, i32, i32, i32
  }
  func.func @transform_2(%arg0: i32, %arg1: i32) -> (i32, i32, i32, i32) {
    %c0_i32 = arith.constant 0 : i32
    %c0_i32_0 = arith.constant 0 : i32
    %c0_i32_1 = arith.constant 0 : i32
    return %arg0, %c0_i32, %arg1, %c0_i32_0 : i32, i32, i32, i32
  }
}

</mosaic_0001>

<llo_original>
// kernel: tpu_custom_call.1
$region0: #{tpu_custom_call.1}
  #allocation0 [shape = 'u32[]', space=smem, size = 0x4, offset = 0x4, fixed_abs, tag = 'smem constant byte address 0x4 - core index']
  #allocation1 [shape = 'u32[144,128]{1,0:T(1,128)}', space=vmem, size = 0x12000, scoped, tag = 'internal scratch']
  %s0 = inlined_call_operand.vmem [shape: f32[108], index: 0, kind: input, shape index: {}]
  %s1 = inlined_call_operand.vmem [shape: f32[2,4,18,18], index: 1, kind: input, shape index: {}]
  %s2 = inlined_call_operand.hbm [shape: f32[2,3,16,16], index: 2, kind: output, shape index: {}]
  %s3 = sld [smem:[#allocation0]]
  $region45: #{tpu_custom_call.1} parent=0
    _
  %s5 = ssub.s32 1, %s3
  %s6 = scalar_select 0, %s5, %s3
  $region1: #{tpu_custom_call.1} parent=0
    #allocation2 [shape = 'u8[512]{0}', space=smem, size = 0x200, scoped, tag = 'input window, operand 0, single buffered']
    #allocation3 [shape = 's32[2]{0}', space=sflag, size = 0x8, scoped, tag = 'scoped memory for tpu_custom_call.1']
    #allocation4 [shape = 's32[2]{0}', space=sflag, size = 0x8, scoped, tag = 'scoped memory for tpu_custom_call.1']
    #allocation5 [shape = 'u8[24576]{0}', space=vmem, size = 0x6000, scoped, tag = 'output window, operand 0']
    %7 = vsyncpa [#allocation4], 0
    %8 = vsyncpa [#allocation3], 0
    %s9 = scalar_lea.sflag [#allocation3], 1
    %10 = vsyncpa %s9, 0
    loop: start=0, step=1, limit=6
    $region2: #{tpu_custom_call.1} parent=1 // loop_pre_header
      _
    $region3: #{tpu_custom_call.1} parent=1 // loop_header
      %s12 = sphi 0, %s16
      %p13 = scmp.ge.s32.totalorder %s12, 6
      %s19 = sphi 0, %s31
      %s20 = sphi 0, %s27
      %s21 = sphi 0, %s19
      %s22 = sphi 0, %s20
      %s23 = sphi 0, %s21
      %s24 = sphi 0, %s22
      %s32 = sphi 0, %s32
      %s34 = sphi 0, %s32
      %s35 = sphi 0, %s34
      %s49 = sphi 0, %s35
      %s55 = sphi 0, %s57
      %s58 = sphi 0, %s55
      %s59 = sphi 0, %s58
      %s75 = sphi 0, %s59
      %s83 = sphi 0, %s85
      %s86 = sphi 0, %s83
      %s87 = sphi 0, %s86
      %s103 = sphi 0, %s87
    $region4: #{tpu_custom_call.1} parent=1 // loop_header_branch
      %15 = sbr.rel (%p13) target = $region8
    $region5: #{tpu_custom_call.1} parent=1 // loop_body
      %s17 = ssub.s32 %s12, 1
      %s18 = ssub.s32 %s12, 2
      %s25 = sadd.s32 1, %s20
      %p26 = scmp.ge.s32.totalorder %s25, 2
      %s27 = scalar_select %p26, 0, %s25
      %s28 = sadd.s32 1, %s19
      %s29 = scalar_select %p26, %s28, %s19
      %p30 = scmp.ge.s32.totalorder %s29, 2
      %s31 = scalar_select %p30, 0, %s29
      %s33 = sadd.s32 %s32, 1
      %p36 = scmp.eq.s32.totalorder %s12, 3
      %p37 = scmp.ne.s32.totalorder %s32, %s34
      %p38 = scmp.eq.s32.totalorder %s12, 0
      %p39 = por %p37, %p38
      %p40 = scmp.ne.s32.totalorder %s32, %s34
      %p41 = scmp.eq.s32.totalorder %s17, 3
      %p42 = por %p40, %p41
      %p43 = scmp.ne.s32.totalorder %s34, %s35
      %p44 = scmp.eq.s32.totalorder %s17, 0
      %p45 = por %p43, %p44
      %p46 = scmp.ne.s32.totalorder %s34, %s35
      %p47 = scmp.eq.s32.totalorder %s18, 3
      %p48 = por %p46, %p47
      %p50 = scmp.ne.s32.totalorder %s35, %s49
      %p51 = scmp.eq.s32.totalorder %s18, 0
      %p52 = por %p50, %p51
      %s53 = ssub.s32 %s19, %s31
      %p54 = scmp.eq.s32.totalorder %s53, 0
      %s56 = sadd.s32 %s55, 1
      %s57 = scalar_select %p54, %s55, %s56
      %p60 = pneg %p54
      %p61 = scmp.eq.s32.totalorder %s12, 3
      %p62 = por %p60, %p61
      %p63 = scmp.ne.s32.totalorder %s55, %s58
      %p64 = scmp.eq.s32.totalorder %s12, 0
      %p65 = por %p63, %p64
      %p66 = scmp.ne.s32.totalorder %s55, %s58
      %p67 = scmp.eq.s32.totalorder %s17, 3
      %p68 = por %p66, %p67
      %p69 = scmp.ne.s32.totalorder %s58, %s59
      %p70 = scmp.eq.s32.totalorder %s17, 0
      %p71 = por %p69, %p70
      %p72 = scmp.ne.s32.totalorder %s58, %s59
      %p73 = scmp.eq.s32.totalorder %s18, 3
      %p74 = por %p72, %p73
      %p76 = scmp.ne.s32.totalorder %s59, %s75
      %p77 = scmp.eq.s32.totalorder %s18, 0
      %p78 = por %p76, %p77
      %s79 = ssub.s32 %s19, %s31
      %s80 = ssub.s32 %s20, %s27
      %s81 = sor.u32 %s79, %s80
      %p82 = scmp.eq.s32.totalorder %s81, 0
      %s84 = sadd.s32 %s83, 1
      %s85 = scalar_select %p82, %s83, %s84
      %p88 = pneg %p82
      %p89 = scmp.eq.s32.totalorder %s12, 3
      %p90 = por %p88, %p89
      %p91 = scmp.ne.s32.totalorder %s83, %s86
      %p92 = scmp.eq.s32.totalorder %s12, 0
      %p93 = por %p91, %p92
      %p94 = scmp.ne.s32.totalorder %s83, %s86
      %p95 = scmp.eq.s32.totalorder %s17, 3
      %p96 = por %p94, %p95
      %p97 = scmp.ne.s32.totalorder %s86, %s87
      %p98 = scmp.eq.s32.totalorder %s17, 0
      %p99 = por %p97, %p98
      %p100 = scmp.ne.s32.totalorder %s86, %s87
      %p101 = scmp.eq.s32.totalorder %s18, 3
      %p102 = por %p100, %p101
      %p104 = scmp.ne.s32.totalorder %s87, %s103
      %p105 = scmp.eq.s32.totalorder %s18, 0
      %p106 = por %p104, %p105
      %p107 = scmp.le.s32.totalorder 1, %s12
      %p108 = scmp.lt.s32.totalorder %s12, 5
      %p109 = pnand %p107, %p108
      %p110 = pneg %p109
      // Predicated region
      $region9: #{tpu_custom_call.1} parent=5 // pred_check
        _
      $region10: #{tpu_custom_call.1} parent=5 // pred_check_branch
        %112 = sbr.rel (%p109) target = $region12
      $region11: #{tpu_custom_call.1} parent=5 // pred_region
        %s113 = ssub.s32 %s12, 1
        // Predicated region
        $region13: #{tpu_custom_call.1} parent=11 // pred_check
          %p114 = pneg %p45
        $region14: #{tpu_custom_call.1} parent=11 // pred_check_branch
          %116 = sbr.rel (%p114) target = $region16
        $region15: #{tpu_custom_call.1} parent=11 // pred_region
          %s118 = ssub.s32 16, 16
          %119 = vsyncadd [#allocation4], %s118
          %s121 = sshll.u32 %s0, 4
          %s122 = int_to_ptr.vmem [resolvable:$true] %s121
          %124 = dma.vmem_to_smem %s122, 16, [#allocation2], [#allocation4]
        $region16: #{tpu_custom_call.1} parent=11 // pred_fallthru
          _
      $region12: #{tpu_custom_call.1} parent=5 // pred_fallthru
        _
      %p125 = scmp.lt.s32.totalorder %s12, 4
      // Predicated region
      $region17: #{tpu_custom_call.1} parent=5 // pred_check
        %p126 = pneg %p125
      $region18: #{tpu_custom_call.1} parent=5 // pred_check_branch
        %128 = sbr.rel (%p126) target = $region20
      $region19: #{tpu_custom_call.1} parent=5 // pred_region
        // Predicated region
        $region21: #{tpu_custom_call.1} parent=19 // pred_check
          %p129 = pneg %p65
        $region22: #{tpu_custom_call.1} parent=19 // pred_check_branch
          %131 = sbr.rel (%p129) target = $region24
        $region23: #{tpu_custom_call.1} parent=19 // pred_region
          %p132 = scmp.lt.s32.totalorder %s19, 1
          %s133 = scalar_select %p132, %s19, 1
          %s134 = smul.addr %s133, 12
          %s135 = smul.addr %s134, 8
          %s136 = scalar_lea.vmem %s1, %s135
        $region24: #{tpu_custom_call.1} parent=19 // pred_fallthru
          _
      $region20: #{tpu_custom_call.1} parent=5 // pred_fallthru
        _
      %p137 = scmp.le.s32.totalorder 1, %s12
      %p138 = scmp.lt.s32.totalorder %s12, 5
      %p139 = pnand %p137, %p138
      %p140 = pneg %p139
      // Predicated region
      $region25: #{tpu_custom_call.1} parent=5 // pred_check
        _
      $region26: #{tpu_custom_call.1} parent=5 // pred_check_branch
        %142 = sbr.rel (%p139) target = $region28
      $region27: #{tpu_custom_call.1} parent=5 // pred_region
        %s143 = ssub.s32 %s12, 1
        // Predicated region
        $region29: #{tpu_custom_call.1} parent=27 // pred_check
          %p144 = pneg %p45
        $region30: #{tpu_custom_call.1} parent=27 // pred_check_branch
          %146 = sbr.rel (%p144) target = $region32
        $region31: #{tpu_custom_call.1} parent=27 // pred_region
          %147 = dma.done [#allocation4], 16
        $region32: #{tpu_custom_call.1} parent=27 // pred_fallthru
          _
        %148 = sfence
        %p149 = pneg %p45
        %p150 = pneg %p42
        %p151 = scmp.lt.s32.totalorder %s21, 1
        %s152 = scalar_select %p151, %s21, 1
        %s153 = smul.addr %s152, 12
        %s154 = smul.addr %s153, 8
        %s155 = scalar_lea.vmem %s1, %s154
        %p156 = pneg %p71
        %p157 = pneg %p68
        %p158 = pneg %p99
        %p159 = pneg %p96
        %s160 = sand.u32 %s86, 1
        %s161 = scalar_lea.sflag [#allocation3], %s160
        %s162 = sand.u32 %s86, 1
        %s163 = smul.addr %s162, 24
        %s164 = scalar_lea.vmem [#allocation5], %s163
        %p165 = scmp.lt.s32.totalorder %s21, 1
        %s166 = scalar_select %p165, %s21, 1
        %s167 = smul.addr %s166, 12
        %s168 = smul.addr %s167, 8
        %s169 = scalar_lea.vmem %s1, %s168
        %s170 = smul.u32 %s22, 8
        %s171 = scalar_lea.vmem %s169, %s170
        %v172 = vld [vmem:[%s171] sm:$0xff]
        %s173 = sld [smem:[#allocation2]]
        %v174 = vstv %s173
        %v175 = vmul.f32 %v174, %v172
        %v176 = vadd.f32 %v175, 0.0
        %s177 = sld [smem:[#allocation2 + $0x24]]
        %v178 = vstv %s177
        %v179 = vmul.f32 %v178, %v172
        %v180 = vadd.f32 %v179, 0.0
        %s181 = sld [smem:[#allocation2 + $0x48]]
        %v182 = vstv %s181
        %v183 = vmul.f32 %v182, %v172
        %v184 = vadd.f32 %v183, 0.0
        %s185 = sld [smem:[#allocation2 + $0x1]]
        %v186 = vstv %s185
        %v187 = vmul.f32 %v186, %v172
        %189 = vrot.lane.b32.xlu0 %v187, 127
        %v190 = vpop.permute.xlu0 %189
        %v192 = vadd.f32 %v176, %v190
        %s193 = sld [smem:[#allocation2 + $0x25]]
        %v194 = vstv %s193
        %v195 = vmul.f32 %v194, %v172
        %197 = vrot.lane.b32.xlu0 %v195, 127
        %v198 = vpop.permute.xlu0 %197
        %v200 = vadd.f32 %v180, %v198
        %s201 = sld [smem:[#allocation2 + $0x49]]
        %v202 = vstv %s201
        %v203 = vmul.f32 %v202, %v172
        %205 = vrot.lane.b32.xlu0 %v203, 127
        %v206 = vpop.permute.xlu0 %205
        %v208 = vadd.f32 %v184, %v206
        %s209 = sld [smem:[#allocation2 + $0x2]]
        %v210 = vstv %s209
        %v211 = vmul.f32 %v210, %v172
        %213 = vrot.lane.b32.xlu0 %v211, 126
        %v214 = vpop.permute.xlu0 %213
        %v216 = vadd.f32 %v192, %v214
        %s217 = sld [smem:[#allocation2 + $0x26]]
        %v218 = vstv %s217
        %v219 = vmul.f32 %v218, %v172
        %221 = vrot.lane.b32.xlu0 %v219, 126
        %v222 = vpop.permute.xlu0 %221
        %v224 = vadd.f32 %v200, %v222
        %s225 = sld [smem:[#allocation2 + $0x4a]]
        %v226 = vstv %s225
        %v227 = vmul.f32 %v226, %v172
        %229 = vrot.lane.b32.xlu0 %v227, 126
        %v230 = vpop.permute.xlu0 %229
        %v232 = vadd.f32 %v208, %v230
        %s233 = sadd.s32 %s170, 1
        %s234 = scalar_lea.vmem %s169, %s233
        %v235 = vld [vmem:[%s234] sm:$0xff]
        %s236 = sld [smem:[#allocation2 + $0x3]]
        %v237 = vstv %s236
        %v238 = vmul.f32 %v237, %v235
        %v239 = vadd.f32 %v216, %v238
        %s240 = sld [smem:[#allocation2 + $0x27]]
        %v241 = vstv %s240
        %v242 = vmul.f32 %v241, %v235
        %v243 = vadd.f32 %v224, %v242
        %s244 = sld [smem:[#allocation2 + $0x4b]]
        %v245 = vstv %s244
        %v246 = vmul.f32 %v245, %v235
        %v247 = vadd.f32 %v232, %v246
        %s248 = sld [smem:[#allocation2 + $0x4]]
        %v249 = vstv %s248
        %v250 = vmul.f32 %v249, %v235
        %252 = vrot.lane.b32.xlu0 %v250, 127
        %v253 = vpop.permute.xlu0 %252
        %v255 = vadd.f32 %v239, %v253
        %s256 = sld [smem:[#allocation2 + $0x28]]
        %v257 = vstv %s256
        %v258 = vmul.f32 %v257, %v235
        %260 = vrot.lane.b32.xlu0 %v258, 127
        %v261 = vpop.permute.xlu0 %260
        %v263 = vadd.f32 %v243, %v261
        %s264 = sld [smem:[#allocation2 + $0x4c]]
        %v265 = vstv %s264
        %v266 = vmul.f32 %v265, %v235
        %268 = vrot.lane.b32.xlu0 %v266, 127
        %v269 = vpop.permute.xlu0 %268
        %v271 = vadd.f32 %v247, %v269
        %s272 = sld [smem:[#allocation2 + $0x5]]
        %v273 = vstv %s272
        %v274 = vmul.f32 %v273, %v235
        %276 = vrot.lane.b32.xlu0 %v274, 126
        %v277 = vpop.permute.xlu0 %276
        %v279 = vadd.f32 %v255, %v277
        %s280 = sld [smem:[#allocation2 + $0x29]]
        %v281 = vstv %s280
        %v282 = vmul.f32 %v281, %v235
        %284 = vrot.lane.b32.xlu0 %v282, 126
        %v285 = vpop.permute.xlu0 %284
        %v287 = vadd.f32 %v263, %v285
        %s288 = sld [smem:[#allocation2 + $0x4d]]
        %v289 = vstv %s288
        %v290 = vmul.f32 %v289, %v235
        %292 = vrot.lane.b32.xlu0 %v290, 126
        %v293 = vpop.permute.xlu0 %292
        %v295 = vadd.f32 %v271, %v293
        %s296 = sadd.s32 %s170, 2
        %s297 = scalar_lea.vmem %s169, %s296
        %v298 = vld [vmem:[%s297] sm:$0xff]
        %s299 = sld [smem:[#allocation2 + $0x6]]
        %v300 = vstv %s299
        %v301 = vmul.f32 %v300, %v298
        %v302 = vadd.f32 %v279, %v301
        %s303 = sld [smem:[#allocation2 + $0x2a]]
        %v304 = vstv %s303
        %v305 = vmul.f32 %v304, %v298
        %v306 = vadd.f32 %v287, %v305
        %s307 = sld [smem:[#allocation2 + $0x4e]]
        %v308 = vstv %s307
        %v309 = vmul.f32 %v308, %v298
        %v310 = vadd.f32 %v295, %v309
        %s311 = sld [smem:[#allocation2 + $0x7]]
        %v312 = vstv %s311
        %v313 = vmul.f32 %v312, %v298
        %315 = vrot.lane.b32.xlu0 %v313, 127
        %v316 = vpop.permute.xlu0 %315
        %v318 = vadd.f32 %v302, %v316
        %s319 = sld [smem:[#allocation2 + $0x2b]]
        %v320 = vstv %s319
        %v321 = vmul.f32 %v320, %v298
        %323 = vrot.lane.b32.xlu0 %v321, 127
        %v324 = vpop.permute.xlu0 %323
        %v326 = vadd.f32 %v306, %v324
        %s327 = sld [smem:[#allocation2 + $0x4f]]
        %v328 = vstv %s327
        %v329 = vmul.f32 %v328, %v298
        %331 = vrot.lane.b32.xlu0 %v329, 127
        %v332 = vpop.permute.xlu0 %331
        %v334 = vadd.f32 %v310, %v332
        %s335 = sld [smem:[#allocation2 + $0x8]]
        %v336 = vstv %s335
        %v337 = vmul.f32 %v336, %v298
        %339 = vrot.lane.b32.xlu0 %v337, 126
        %v340 = vpop.permute.xlu0 %339
        %v342 = vadd.f32 %v318, %v340
        %s343 = sld [smem:[#allocation2 + $0x2c]]
        %v344 = vstv %s343
        %v345 = vmul.f32 %v344, %v298
        %347 = vrot.lane.b32.xlu0 %v345, 126
        %v348 = vpop.permute.xlu0 %347
        %v350 = vadd.f32 %v326, %v348
        %s351 = sld [smem:[#allocation2 + $0x50]]
        %v352 = vstv %s351
        %v353 = vmul.f32 %v352, %v298
        %355 = vrot.lane.b32.xlu0 %v353, 126
        %v356 = vpop.permute.xlu0 %355
        %v358 = vadd.f32 %v334, %v356
        %s359 = sadd.s32 %s170, 24
        %s360 = scalar_lea.vmem %s169, %s359
        %v361 = vld [vmem:[%s360] sm:$0xff]
        %s362 = sld [smem:[#allocation2 + $0x9]]
        %v363 = vstv %s362
        %v364 = vmul.f32 %v363, %v361
        %v365 = vadd.f32 %v342, %v364
        %s366 = sld [smem:[#allocation2 + $0x2d]]
        %v367 = vstv %s366
        %v368 = vmul.f32 %v367, %v361
        %v369 = vadd.f32 %v350, %v368
        %s370 = sld [smem:[#allocation2 + $0x51]]
        %v371 = vstv %s370
        %v372 = vmul.f32 %v371, %v361
        %v373 = vadd.f32 %v358, %v372
        %s374 = sld [smem:[#allocation2 + $0xa]]
        %v375 = vstv %s374
        %v376 = vmul.f32 %v375, %v361
        %378 = vrot.lane.b32.xlu0 %v376, 127
        %v379 = vpop.permute.xlu0 %378
        %v381 = vadd.f32 %v365, %v379
        %s382 = sld [smem:[#allocation2 + $0x2e]]
        %v383 = vstv %s382
        %v384 = vmul.f32 %v383, %v361
        %386 = vrot.lane.b32.xlu0 %v384, 127
        %v387 = vpop.permute.xlu0 %386
        %v389 = vadd.f32 %v369, %v387
        %s390 = sld [smem:[#allocation2 + $0x52]]
        %v391 = vstv %s390
        %v392 = vmul.f32 %v391, %v361
        %394 = vrot.lane.b32.xlu0 %v392, 127
        %v395 = vpop.permute.xlu0 %394
        %v397 = vadd.f32 %v373, %v395
        %s398 = sld [smem:[#allocation2 + $0xb]]
        %v399 = vstv %s398
        %v400 = vmul.f32 %v399, %v361
        %402 = vrot.lane.b32.xlu0 %v400, 126
        %v403 = vpop.permute.xlu0 %402
        %v405 = vadd.f32 %v381, %v403
        %s406 = sld [smem:[#allocation2 + $0x2f]]
        %v407 = vstv %s406
        %v408 = vmul.f32 %v407, %v361
        %410 = vrot.lane.b32.xlu0 %v408, 126
        %v411 = vpop.permute.xlu0 %410
        %v413 = vadd.f32 %v389, %v411
        %s414 = sld [smem:[#allocation2 + $0x53]]
        %v415 = vstv %s414
        %v416 = vmul.f32 %v415, %v361
        %418 = vrot.lane.b32.xlu0 %v416, 126
        %v419 = vpop.permute.xlu0 %418
        %v421 = vadd.f32 %v397, %v419
        %s422 = sadd.s32 %s233, 24
        %s423 = scalar_lea.vmem %s169, %s422
        %v424 = vld [vmem:[%s423] sm:$0xff]
        %s425 = sld [smem:[#allocation2 + $0xc]]
        %v426 = vstv %s425
        %v427 = vmul.f32 %v426, %v424
        %v428 = vadd.f32 %v405, %v427
        %s429 = sld [smem:[#allocation2 + $0x30]]
        %v430 = vstv %s429
        %v431 = vmul.f32 %v430, %v424
        %v432 = vadd.f32 %v413, %v431
        %s433 = sld [smem:[#allocation2 + $0x54]]
        %v434 = vstv %s433
        %v435 = vmul.f32 %v434, %v424
        %v436 = vadd.f32 %v421, %v435
        %s437 = sld [smem:[#allocation2 + $0xd]]
        %v438 = vstv %s437
        %v439 = vmul.f32 %v438, %v424
        %441 = vrot.lane.b32.xlu0 %v439, 127
        %v442 = vpop.permute.xlu0 %441
        %v444 = vadd.f32 %v428, %v442
        %s445 = sld [smem:[#allocation2 + $0x31]]
        %v446 = vstv %s445
        %v447 = vmul.f32 %v446, %v424
        %449 = vrot.lane.b32.xlu0 %v447, 127
        %v450 = vpop.permute.xlu0 %449
        %v452 = vadd.f32 %v432, %v450
        %s453 = sld [smem:[#allocation2 + $0x55]]
        %v454 = vstv %s453
        %v455 = vmul.f32 %v454, %v424
        %457 = vrot.lane.b32.xlu0 %v455, 127
        %v458 = vpop.permute.xlu0 %457
        %v460 = vadd.f32 %v436, %v458
        %s461 = sld [smem:[#allocation2 + $0xe]]
        %v462 = vstv %s461
        %v463 = vmul.f32 %v462, %v424
        %465 = vrot.lane.b32.xlu0 %v463, 126
        %v466 = vpop.permute.xlu0 %465
        %v468 = vadd.f32 %v444, %v466
        %s469 = sld [smem:[#allocation2 + $0x32]]
        %v470 = vstv %s469
        %v471 = vmul.f32 %v470, %v424
        %473 = vrot.lane.b32.xlu0 %v471, 126
        %v474 = vpop.permute.xlu0 %473
        %v476 = vadd.f32 %v452, %v474
        %s477 = sld [smem:[#allocation2 + $0x56]]
        %v478 = vstv %s477
        %v479 = vmul.f32 %v478, %v424
        %481 = vrot.lane.b32.xlu0 %v479, 126
        %v482 = vpop.permute.xlu0 %481
        %v484 = vadd.f32 %v460, %v482
        %s485 = sadd.s32 %s296, 24
        %s486 = scalar_lea.vmem %s169, %s485
        %v487 = vld [vmem:[%s486] sm:$0xff]
        %s488 = sld [smem:[#allocation2 + $0xf]]
        %v489 = vstv %s488
        %v490 = vmul.f32 %v489, %v487
        %v491 = vadd.f32 %v468, %v490
        %s492 = sld [smem:[#allocation2 + $0x33]]
        %v493 = vstv %s492
        %v494 = vmul.f32 %v493, %v487
        %v495 = vadd.f32 %v476, %v494
        %s496 = sld [smem:[#allocation2 + $0x57]]
        %v497 = vstv %s496
        %v498 = vmul.f32 %v497, %v487
        %v499 = vadd.f32 %v484, %v498
        %s500 = sld [smem:[#allocation2 + $0x10]]
        %v501 = vstv %s500
        %v502 = vmul.f32 %v501, %v487
        %504 = vrot.lane.b32.xlu0 %v502, 127
        %v505 = vpop.permute.xlu0 %504
        %v507 = vadd.f32 %v491, %v505
        %s508 = sld [smem:[#allocation2 + $0x34]]
        %v509 = vstv %s508
        %v510 = vmul.f32 %v509, %v487
        %512 = vrot.lane.b32.xlu0 %v510, 127
        %v513 = vpop.permute.xlu0 %512
        %v515 = vadd.f32 %v495, %v513
        %s516 = sld [smem:[#allocation2 + $0x58]]
        %v517 = vstv %s516
        %v518 = vmul.f32 %v517, %v487
        %520 = vrot.lane.b32.xlu0 %v518, 127
        %v521 = vpop.permute.xlu0 %520
        %v523 = vadd.f32 %v499, %v521
        %s524 = sld [smem:[#allocation2 + $0x11]]
        %v525 = vstv %s524
        %v526 = vmul.f32 %v525, %v487
        %528 = vrot.lane.b32.xlu0 %v526, 126
        %v529 = vpop.permute.xlu0 %528
        %v531 = vadd.f32 %v507, %v529
        %s532 = sld [smem:[#allocation2 + $0x35]]
        %v533 = vstv %s532
        %v534 = vmul.f32 %v533, %v487
        %536 = vrot.lane.b32.xlu0 %v534, 126
        %v537 = vpop.permute.xlu0 %536
        %v539 = vadd.f32 %v515, %v537
        %s540 = sld [smem:[#allocation2 + $0x59]]
        %v541 = vstv %s540
        %v542 = vmul.f32 %v541, %v487
        %544 = vrot.lane.b32.xlu0 %v542, 126
        %v545 = vpop.permute.xlu0 %544
        %v547 = vadd.f32 %v523, %v545
        %s548 = sadd.s32 %s170, 48
        %s549 = scalar_lea.vmem %s169, %s548
        %v550 = vld [vmem:[%s549] sm:$0xff]
        %s551 = sld [smem:[#allocation2 + $0x12]]
        %v552 = vstv %s551
        %v553 = vmul.f32 %v552, %v550
        %v554 = vadd.f32 %v531, %v553
        %s555 = sld [smem:[#allocation2 + $0x36]]
        %v556 = vstv %s555
        %v557 = vmul.f32 %v556, %v550
        %v558 = vadd.f32 %v539, %v557
        %s559 = sld [smem:[#allocation2 + $0x5a]]
        %v560 = vstv %s559
        %v561 = vmul.f32 %v560, %v550
        %v562 = vadd.f32 %v547, %v561
        %s563 = sld [smem:[#allocation2 + $0x13]]
        %v564 = vstv %s563
        %v565 = vmul.f32 %v564, %v550
        %567 = vrot.lane.b32.xlu0 %v565, 127
        %v568 = vpop.permute.xlu0 %567
        %v570 = vadd.f32 %v554, %v568
        %s571 = sld [smem:[#allocation2 + $0x37]]
        %v572 = vstv %s571
        %v573 = vmul.f32 %v572, %v550
        %575 = vrot.lane.b32.xlu0 %v573, 127
        %v576 = vpop.permute.xlu0 %575
        %v578 = vadd.f32 %v558, %v576
        %s579 = sld [smem:[#allocation2 + $0x5b]]
        %v580 = vstv %s579
        %v581 = vmul.f32 %v580, %v550
        %583 = vrot.lane.b32.xlu0 %v581, 127
        %v584 = vpop.permute.xlu0 %583
        %v586 = vadd.f32 %v562, %v584
        %s587 = sld [smem:[#allocation2 + $0x14]]
        %v588 = vstv %s587
        %v589 = vmul.f32 %v588, %v550
        %591 = vrot.lane.b32.xlu0 %v589, 126
        %v592 = vpop.permute.xlu0 %591
        %v594 = vadd.f32 %v570, %v592
        %s595 = sld [smem:[#allocation2 + $0x38]]
        %v596 = vstv %s595
        %v597 = vmul.f32 %v596, %v550
        %599 = vrot.lane.b32.xlu0 %v597, 126
        %v600 = vpop.permute.xlu0 %599
        %v602 = vadd.f32 %v578, %v600
        %s603 = sld [smem:[#allocation2 + $0x5c]]
        %v604 = vstv %s603
        %v605 = vmul.f32 %v604, %v550
        %607 = vrot.lane.b32.xlu0 %v605, 126
        %v608 = vpop.permute.xlu0 %607
        %v610 = vadd.f32 %v586, %v608
        %s611 = sadd.s32 %s233, 48
        %s612 = scalar_lea.vmem %s169, %s611
        %v613 = vld [vmem:[%s612] sm:$0xff]
        %s614 = sld [smem:[#allocation2 + $0x15]]
        %v615 = vstv %s614
        %v616 = vmul.f32 %v615, %v613
        %v617 = vadd.f32 %v594, %v616
        %s618 = sld [smem:[#allocation2 + $0x39]]
        %v619 = vstv %s618
        %v620 = vmul.f32 %v619, %v613
        %v621 = vadd.f32 %v602, %v620
        %s622 = sld [smem:[#allocation2 + $0x5d]]
        %v623 = vstv %s622
        %v624 = vmul.f32 %v623, %v613
        %v625 = vadd.f32 %v610, %v624
        %s626 = sld [smem:[#allocation2 + $0x16]]
        %v627 = vstv %s626
        %v628 = vmul.f32 %v627, %v613
        %630 = vrot.lane.b32.xlu0 %v628, 127
        %v631 = vpop.permute.xlu0 %630
        %v633 = vadd.f32 %v617, %v631
        %s634 = sld [smem:[#allocation2 + $0x3a]]
        %v635 = vstv %s634
        %v636 = vmul.f32 %v635, %v613
        %638 = vrot.lane.b32.xlu0 %v636, 127
        %v639 = vpop.permute.xlu0 %638
        %v641 = vadd.f32 %v621, %v639
        %s642 = sld [smem:[#allocation2 + $0x5e]]
        %v643 = vstv %s642
        %v644 = vmul.f32 %v643, %v613
        %646 = vrot.lane.b32.xlu0 %v644, 127
        %v647 = vpop.permute.xlu0 %646
        %v649 = vadd.f32 %v625, %v647
        %s650 = sld [smem:[#allocation2 + $0x17]]
        %v651 = vstv %s650
        %v652 = vmul.f32 %v651, %v613
        %654 = vrot.lane.b32.xlu0 %v652, 126
        %v655 = vpop.permute.xlu0 %654
        %v657 = vadd.f32 %v633, %v655
        %s658 = sld [smem:[#allocation2 + $0x3b]]
        %v659 = vstv %s658
        %v660 = vmul.f32 %v659, %v613
        %662 = vrot.lane.b32.xlu0 %v660, 126
        %v663 = vpop.permute.xlu0 %662
        %v665 = vadd.f32 %v641, %v663
        %s666 = sld [smem:[#allocation2 + $0x5f]]
        %v667 = vstv %s666
        %v668 = vmul.f32 %v667, %v613
        %670 = vrot.lane.b32.xlu0 %v668, 126
        %v671 = vpop.permute.xlu0 %670
        %v673 = vadd.f32 %v649, %v671
        %s674 = sadd.s32 %s296, 48
        %s675 = scalar_lea.vmem %s169, %s674
        %v676 = vld [vmem:[%s675] sm:$0xff]
        %s677 = sld [smem:[#allocation2 + $0x18]]
        %v678 = vstv %s677
        %v679 = vmul.f32 %v678, %v676
        %v680 = vadd.f32 %v657, %v679
        %s681 = sld [smem:[#allocation2 + $0x3c]]
        %v682 = vstv %s681
        %v683 = vmul.f32 %v682, %v676
        %v684 = vadd.f32 %v665, %v683
        %s685 = sld [smem:[#allocation2 + $0x60]]
        %v686 = vstv %s685
        %v687 = vmul.f32 %v686, %v676
        %v688 = vadd.f32 %v673, %v687
        %s689 = sld [smem:[#allocation2 + $0x19]]
        %v690 = vstv %s689
        %v691 = vmul.f32 %v690, %v676
        %693 = vrot.lane.b32.xlu0 %v691, 127
        %v694 = vpop.permute.xlu0 %693
        %v696 = vadd.f32 %v680, %v694
        %s697 = sld [smem:[#allocation2 + $0x3d]]
        %v698 = vstv %s697
        %v699 = vmul.f32 %v698, %v676
        %701 = vrot.lane.b32.xlu0 %v699, 127
        %v702 = vpop.permute.xlu0 %701
        %v704 = vadd.f32 %v684, %v702
        %s705 = sld [smem:[#allocation2 + $0x61]]
        %v706 = vstv %s705
        %v707 = vmul.f32 %v706, %v676
        %709 = vrot.lane.b32.xlu0 %v707, 127
        %v710 = vpop.permute.xlu0 %709
        %v712 = vadd.f32 %v688, %v710
        %s713 = sld [smem:[#allocation2 + $0x1a]]
        %v714 = vstv %s713
        %v715 = vmul.f32 %v714, %v676
        %717 = vrot.lane.b32.xlu0 %v715, 126
        %v718 = vpop.permute.xlu0 %717
        %v720 = vadd.f32 %v696, %v718
        %s721 = sld [smem:[#allocation2 + $0x3e]]
        %v722 = vstv %s721
        %v723 = vmul.f32 %v722, %v676
        %725 = vrot.lane.b32.xlu0 %v723, 126
        %v726 = vpop.permute.xlu0 %725
        %v728 = vadd.f32 %v704, %v726
        %s729 = sld [smem:[#allocation2 + $0x62]]
        %v730 = vstv %s729
        %v731 = vmul.f32 %v730, %v676
        %733 = vrot.lane.b32.xlu0 %v731, 126
        %v734 = vpop.permute.xlu0 %733
        %v736 = vadd.f32 %v712, %v734
        %s737 = sadd.s32 %s170, 72
        %s738 = scalar_lea.vmem %s169, %s737
        %v739 = vld [vmem:[%s738] sm:$0xff]
        %s740 = sld [smem:[#allocation2 + $0x1b]]
        %v741 = vstv %s740
        %v742 = vmul.f32 %v741, %v739
        %v743 = vadd.f32 %v720, %v742
        %s744 = sld [smem:[#allocation2 + $0x3f]]
        %v745 = vstv %s744
        %v746 = vmul.f32 %v745, %v739
        %v747 = vadd.f32 %v728, %v746
        %s748 = sld [smem:[#allocation2 + $0x63]]
        %v749 = vstv %s748
        %v750 = vmul.f32 %v749, %v739
        %v751 = vadd.f32 %v736, %v750
        %s752 = sld [smem:[#allocation2 + $0x1c]]
        %v753 = vstv %s752
        %v754 = vmul.f32 %v753, %v739
        %756 = vrot.lane.b32.xlu0 %v754, 127
        %v757 = vpop.permute.xlu0 %756
        %v759 = vadd.f32 %v743, %v757
        %s760 = sld [smem:[#allocation2 + $0x40]]
        %v761 = vstv %s760
        %v762 = vmul.f32 %v761, %v739
        %764 = vrot.lane.b32.xlu0 %v762, 127
        %v765 = vpop.permute.xlu0 %764
        %v767 = vadd.f32 %v747, %v765
        %s768 = sld [smem:[#allocation2 + $0x64]]
        %v769 = vstv %s768
        %v770 = vmul.f32 %v769, %v739
        %772 = vrot.lane.b32.xlu0 %v770, 127
        %v773 = vpop.permute.xlu0 %772
        %v775 = vadd.f32 %v751, %v773
        %s776 = sld [smem:[#allocation2 + $0x1d]]
        %v777 = vstv %s776
        %v778 = vmul.f32 %v777, %v739
        %780 = vrot.lane.b32.xlu0 %v778, 126
        %v781 = vpop.permute.xlu0 %780
        %v783 = vadd.f32 %v759, %v781
        %s784 = sld [smem:[#allocation2 + $0x41]]
        %v785 = vstv %s784
        %v786 = vmul.f32 %v785, %v739
        %788 = vrot.lane.b32.xlu0 %v786, 126
        %v789 = vpop.permute.xlu0 %788
        %v791 = vadd.f32 %v767, %v789
        %s792 = sld [smem:[#allocation2 + $0x65]]
        %v793 = vstv %s792
        %v794 = vmul.f32 %v793, %v739
        %796 = vrot.lane.b32.xlu0 %v794, 126
        %v797 = vpop.permute.xlu0 %796
        %v799 = vadd.f32 %v775, %v797
        %s800 = sadd.s32 %s233, 72
        %s801 = scalar_lea.vmem %s169, %s800
        %v802 = vld [vmem:[%s801] sm:$0xff]
        %s803 = sld [smem:[#allocation2 + $0x1e]]
        %v804 = vstv %s803
        %v805 = vmul.f32 %v804, %v802
        %v806 = vadd.f32 %v783, %v805
        %s807 = sld [smem:[#allocation2 + $0x42]]
        %v808 = vstv %s807
        %v809 = vmul.f32 %v808, %v802
        %v810 = vadd.f32 %v791, %v809
        %s811 = sld [smem:[#allocation2 + $0x66]]
        %v812 = vstv %s811
        %v813 = vmul.f32 %v812, %v802
        %v814 = vadd.f32 %v799, %v813
        %s815 = sld [smem:[#allocation2 + $0x1f]]
        %v816 = vstv %s815
        %v817 = vmul.f32 %v816, %v802
        %819 = vrot.lane.b32.xlu0 %v817, 127
        %v820 = vpop.permute.xlu0 %819
        %v822 = vadd.f32 %v806, %v820
        %s823 = sld [smem:[#allocation2 + $0x43]]
        %v824 = vstv %s823
        %v825 = vmul.f32 %v824, %v802
        %827 = vrot.lane.b32.xlu0 %v825, 127
        %v828 = vpop.permute.xlu0 %827
        %v830 = vadd.f32 %v810, %v828
        %s831 = sld [smem:[#allocation2 + $0x67]]
        %v832 = vstv %s831
        %v833 = vmul.f32 %v832, %v802
        %835 = vrot.lane.b32.xlu0 %v833, 127
        %v836 = vpop.permute.xlu0 %835
        %v838 = vadd.f32 %v814, %v836
        %s839 = sld [smem:[#allocation2 + $0x20]]
        %v840 = vstv %s839
        %v841 = vmul.f32 %v840, %v802
        %843 = vrot.lane.b32.xlu0 %v841, 126
        %v844 = vpop.permute.xlu0 %843
        %v846 = vadd.f32 %v822, %v844
        %s847 = sld [smem:[#allocation2 + $0x44]]
        %v848 = vstv %s847
        %v849 = vmul.f32 %v848, %v802
        %851 = vrot.lane.b32.xlu0 %v849, 126
        %v852 = vpop.permute.xlu0 %851
        %v854 = vadd.f32 %v830, %v852
        %s855 = sld [smem:[#allocation2 + $0x68]]
        %v856 = vstv %s855
        %v857 = vmul.f32 %v856, %v802
        %859 = vrot.lane.b32.xlu0 %v857, 126
        %v860 = vpop.permute.xlu0 %859
        %v862 = vadd.f32 %v838, %v860
        %s863 = sadd.s32 %s296, 72
        %s864 = scalar_lea.vmem %s169, %s863
        %v865 = vld [vmem:[%s864] sm:$0xff]
        %s866 = sld [smem:[#allocation2 + $0x21]]
        %v867 = vstv %s866
        %v868 = vmul.f32 %v867, %v865
        %v869 = vadd.f32 %v846, %v868
        %s870 = sld [smem:[#allocation2 + $0x45]]
        %v871 = vstv %s870
        %v872 = vmul.f32 %v871, %v865
        %v873 = vadd.f32 %v854, %v872
        %s874 = sld [smem:[#allocation2 + $0x69]]
        %v875 = vstv %s874
        %v876 = vmul.f32 %v875, %v865
        %v877 = vadd.f32 %v862, %v876
        %s878 = sld [smem:[#allocation2 + $0x22]]
        %v879 = vstv %s878
        %v880 = vmul.f32 %v879, %v865
        %882 = vrot.lane.b32.xlu0 %v880, 127
        %v883 = vpop.permute.xlu0 %882
        %v885 = vadd.f32 %v869, %v883
        %s886 = sld [smem:[#allocation2 + $0x46]]
        %v887 = vstv %s886
        %v888 = vmul.f32 %v887, %v865
        %890 = vrot.lane.b32.xlu0 %v888, 127
        %v891 = vpop.permute.xlu0 %890
        %v893 = vadd.f32 %v873, %v891
        %s894 = sld [smem:[#allocation2 + $0x6a]]
        %v895 = vstv %s894
        %v896 = vmul.f32 %v895, %v865
        %898 = vrot.lane.b32.xlu0 %v896, 127
        %v899 = vpop.permute.xlu0 %898
        %v901 = vadd.f32 %v877, %v899
        %s902 = sld [smem:[#allocation2 + $0x23]]
        %v903 = vstv %s902
        %v904 = vmul.f32 %v903, %v865
        %906 = vrot.lane.b32.xlu0 %v904, 126
        %v907 = vpop.permute.xlu0 %906
        %v909 = vadd.f32 %v885, %v907
        %s910 = sld [smem:[#allocation2 + $0x47]]
        %v911 = vstv %s910
        %v912 = vmul.f32 %v911, %v865
        %914 = vrot.lane.b32.xlu0 %v912, 126
        %v915 = vpop.permute.xlu0 %914
        %v917 = vadd.f32 %v893, %v915
        %s918 = sld [smem:[#allocation2 + $0x6b]]
        %v919 = vstv %s918
        %v920 = vmul.f32 %v919, %v865
        %922 = vrot.lane.b32.xlu0 %v920, 126
        %v923 = vpop.permute.xlu0 %922
        %v925 = vadd.f32 %v901, %v923
        %v926 = vtanh.pop %v909
        %vm927 = vcmask 130048
        %928 = vst.msk [vmem:[%s164] sm:$0xff] %vm927, %v926
        %v929 = vtanh.pop %v917
        %s930 = scalar_lea.vmem %s164, 8 [#allocation5]
        %931 = vst.msk [vmem:[%s930] sm:$0xff] %vm927, %v929
        %v932 = vtanh.pop %v925
        %s933 = scalar_lea.vmem %s164, 16 [#allocation5]
        %934 = vst.msk [vmem:[%s933] sm:$0xff] %vm927, %v932
        %s935 = sand.u32 %s86, 1
        %s936 = scalar_lea.sflag [#allocation3], %s935
        %s937 = sand.u32 %s86, 1
        %s938 = smul.addr %s937, 24
        %s939 = scalar_lea.vmem [#allocation5], %s938
        // Predicated region
        $region33: #{tpu_custom_call.1} parent=27 // pred_check
          %p940 = pneg %p96
        $region34: #{tpu_custom_call.1} parent=27 // pred_check_branch
          %942 = sbr.rel (%p940) target = $region36
        $region35: #{tpu_custom_call.1} parent=27 // pred_region
          %s944 = ssub.s32 384, 384
          %945 = vsyncadd %s936, %s944
          %s946 = smul.addr %s21, 6
          %s947 = sadd.s32 %s22, %s946
          %s948 = smul.addr %s947, 128
          %s949 = scalar_lea.hbm %s2, %s948
          %s950 = sshll.u32 %s939, 4
          %s951 = int_to_ptr.vmem [resolvable:$true] %s950
          %956 = dma.vmem_to_hbm [thread:$0]  %s951, 384, %s949, %s936, 128, 256, 8
        $region36: #{tpu_custom_call.1} parent=27 // pred_fallthru
          _
      $region28: #{tpu_custom_call.1} parent=5 // pred_fallthru
        _
      %p957 = scmp.le.s32.totalorder 2, %s12
      // Predicated region
      $region37: #{tpu_custom_call.1} parent=5 // pred_check
        %p958 = pneg %p957
      $region38: #{tpu_custom_call.1} parent=5 // pred_check_branch
        %960 = sbr.rel (%p958) target = $region40
      $region39: #{tpu_custom_call.1} parent=5 // pred_region
        %s961 = ssub.s32 %s12, 2
        // Predicated region
        $region41: #{tpu_custom_call.1} parent=39 // pred_check
          %p962 = pneg %p102
        $region42: #{tpu_custom_call.1} parent=39 // pred_check_branch
          %964 = sbr.rel (%p962) target = $region44
        $region43: #{tpu_custom_call.1} parent=39 // pred_region
          %s965 = sand.u32 %s87, 1
          %s966 = scalar_lea.sflag [#allocation3], %s965
          %s967 = sand.u32 %s87, 1
          %s968 = smul.addr %s967, 24
          %s969 = scalar_lea.vmem [#allocation5], %s968
          %970 = dma.done %s966, 384
        $region44: #{tpu_custom_call.1} parent=39 // pred_fallthru
          _
      $region40: #{tpu_custom_call.1} parent=5 // pred_fallthru
        _
    $region6: #{tpu_custom_call.1} parent=1 // loop_footer
      %s16 = sadd.s32 1, %s12
    $region7: #{tpu_custom_call.1} parent=1 // loop_footer_branch
      %11 = sbr.rel target = $region3
    $region8: #{tpu_custom_call.1} parent=1 // loop_exit
      _
    %971 = vsyncpa [#allocation3], 1
    %s972 = scalar_lea.sflag [#allocation3], 1
    %973 = vsyncpa %s972, 1
    %974 = vsyncpa [#allocation4], 1
    %s975 = scalar_lea.sflag [#allocation4], 1
    %976 = vsyncpa %s975, 1

</llo_original>
